<compile_context>
chip_gen: v7x
topology: tpu7x:2x2x1
jax: 0.10.0
libtpu: 0.0.40
codegen_flags: <defaults>
</compile_context>

<pallas_src>
import math

import jax
import jax.numpy as jnp
from jax import lax
from jax.experimental import pallas as pl
from jax.experimental.pallas import tpu as pltpu

EPS = 1e-5      # PyTorch LayerNorm default eps
LANE = 128      # TPU lane width
SUB = 8         # TPU sublane width


def _round_up(n, m):
    return -(-n // m) * m


# ---------------------------------------------------------------------------
# Fused whole-network kernel factory (one batch element per grid step)
# ---------------------------------------------------------------------------
def make_fused_kernel(num_layers, S, T, T_pad, D, woff, poff):
    bf16 = jnp.bfloat16
    inv_d = 1.0 / float(D)

    def kernel(x_ref, w_ref, p_ref, o_ref):
        # ---- static slab views -------------------------------------------
        def W(name):                       # (128, 128) bf16 weight block
            r = woff[name]
            return w_ref[r:r + LANE, :]

        def P(name):                       # (1, 128) f32 bias / LN row
            r = poff[name]
            return p_ref[r:r + 1, :]

        def mm(a, name):                   # bf16 MXU matmul, f32 accumulate
            return jnp.dot(a.astype(bf16), W(name),
                           preferred_element_type=jnp.float32)

        lane_idx = lax.broadcasted_iota(jnp.int32, (1, LANE), 1)
        feat_mask = (lane_idx < D).astype(jnp.float32)   # real-feature lanes

        def layernorm(a, pfx):
            # feature dim is 128 lanes with lanes D:128 == 0 by construction
            mean = jnp.sum(a, axis=-1, keepdims=True) * inv_d
            cen = (a - mean) * feat_mask
            var = jnp.sum(cen * cen, axis=-1, keepdims=True) * inv_d
            return (cen * lax.rsqrt(var + EPS) * P(pfx + "_ln_g")
                    + P(pfx + "_ln_b"))

        def softmax(s):
            s = s - jnp.max(s, axis=-1, keepdims=True)
            e = jnp.exp(s)
            return e * pl.reciprocal(jnp.sum(e, axis=-1, keepdims=True),
                                     approx=True)

        def attn_core(q, k, v, kmask=None):
            # contract last axes directly -> no transposed copy of k
            s = lax.dot_general(q.astype(bf16), k.astype(bf16),
                                (((1,), (1,)), ((), ())),
                                preferred_element_type=jnp.float32)
            if kmask is not None:
                s = s + kmask
            p = softmax(s)
            return jnp.dot(p.astype(bf16), v.astype(bf16),
                           preferred_element_type=jnp.float32)

        def mha_ln(x_q, x_kv, pfx, kmask=None):
            q = mm(x_q, pfx + "_wq") + P(pfx + "_bq")   # scale folded in wq/bq
            k = mm(x_kv, pfx + "_wk") + P(pfx + "_bk")
            v = mm(x_kv, pfx + "_wv") + P(pfx + "_bv")
            a = attn_core(q, k, v, kmask)
            proj = mm(a, pfx + "_wo") + P(pfx + "_bo")
            return layernorm(x_q + proj, pfx)

        def ffn_ln(a, pfx):
            h = jnp.maximum(mm(a, pfx + "_w1") + P(pfx + "_b1"), 0.0)
            f = mm(h, pfx + "_w2") + P(pfx + "_b2")
            return layernorm(a + f, pfx)

        # ---------------- encoder (this batch element) ----------------
        x = x_ref[...].astype(jnp.float32)              # (S, 128)
        for i in range(num_layers):
            x = mha_ln(x, x, f"enc{i}_sa")
            x = ffn_ln(x, f"enc{i}_ff")
        mem = x                                         # (S, 128)

        # ---------------- decoder (concept queries) -------------------
        # mask padded key positions (T..T_pad) in decoder self-attention
        kidx = lax.broadcasted_iota(jnp.int32, (1, T_pad), 1)
        kmask = jnp.where(kidx < T, 0.0, -1e30).astype(jnp.float32)

        r0 = poff["concepts"]
        t = p_ref[r0:r0 + T_pad, :]                     # (T_pad, 128) f32
        for i in range(num_layers):
            t = mha_ln(t, t, f"dec{i}_sa", kmask)
            t = mha_ln(t, mem, f"dec{i}_ca")
            t = ffn_ln(t, f"dec{i}_ff")

        o_ref[...] = t.astype(o_ref.dtype)              # (T_pad, 128)

    return kernel


# ---------------------------------------------------------------------------
# Parameter construction (deterministic, synthetic) — PyTorch-like layout
# ---------------------------------------------------------------------------
def _init_attn_params(key, d):
    ks = jax.random.split(key, 4)
    s = 1.0 / math.sqrt(d)
    return {
        "wq": jax.random.normal(ks[0], (d, d), jnp.float32) * s,
        "wk": jax.random.normal(ks[1], (d, d), jnp.float32) * s,
        "wv": jax.random.normal(ks[2], (d, d), jnp.float32) * s,
        "bq": jnp.zeros((1, d), jnp.float32),
        "bk": jnp.zeros((1, d), jnp.float32),
        "bv": jnp.zeros((1, d), jnp.float32),
        "wo": jax.random.normal(ks[3], (d, d), jnp.float32) * s,
        "bo": jnp.zeros((1, d), jnp.float32),
        "ln_g": jnp.ones((1, d), jnp.float32),
        "ln_b": jnp.zeros((1, d), jnp.float32),
    }


def _init_ffn_params(key, d, f):
    ks = jax.random.split(key, 2)
    return {
        "w1": jax.random.normal(ks[0], (d, f), jnp.float32) * (1.0 / math.sqrt(d)),
        "b1": jnp.zeros((1, f), jnp.float32),
        "w2": jax.random.normal(ks[1], (f, d), jnp.float32) * (1.0 / math.sqrt(f)),
        "b2": jnp.zeros((1, d), jnp.float32),
        "ln_g": jnp.ones((1, d), jnp.float32),
        "ln_b": jnp.zeros((1, d), jnp.float32),
    }


def init_transformer_net_params(key, d_model, ffw_dim, n_decoder_concepts, num_layers):
    keys = jax.random.split(key, 2 * num_layers * 3 + 1)
    ki = iter(keys)
    enc_layers = []
    for _ in range(num_layers):
        enc_layers.append({
            "sa": _init_attn_params(next(ki), d_model),
            "ff": _init_ffn_params(next(ki), d_model, ffw_dim),
        })
    dec_layers = []
    for _ in range(num_layers):
        dec_layers.append({
            "sa": _init_attn_params(next(ki), d_model),
            "ca": _init_attn_params(next(ki), d_model),
            "ff": _init_ffn_params(next(ki), d_model, ffw_dim),
        })
    concept_embeds = jax.random.normal(
        next(ki), (n_decoder_concepts, d_model), jnp.float32)
    return {"enc_layers": enc_layers, "dec_layers": dec_layers,
            "concept_embeds": concept_embeds}


# ---------------------------------------------------------------------------
# Host-side packing into two lane-dense slabs:
#   * weight slab (bf16): every matmul weight zero-padded to a (128,128) block
#   * param slab  (f32) : biases / LN params as (8,128) row blocks, concept
#                         embeddings as a (T_pad,128) block
#   * 1/sqrt(D) attention scale folded into wq / bq
# ---------------------------------------------------------------------------
class _SlabPacker:
    def __init__(self, dtype):
        self.dtype = dtype
        self.blocks = []
        self.offsets = {}
        self.n_rows = 0

    def add(self, name, arr, rows=None):
        r, c = arr.shape
        rows = rows if rows is not None else _round_up(r, SUB)
        assert rows >= r and rows % SUB == 0 and c <= LANE
        blk = jnp.zeros((rows, LANE), self.dtype)
        blk = blk.at[:r, :c].set(arr.astype(self.dtype))
        self.offsets[name] = self.n_rows
        self.blocks.append(blk)
        self.n_rows += rows

    def finish(self):
        return jnp.concatenate(self.blocks, axis=0), self.offsets


def pack_params(params, D, T_pad):
    scale = jnp.float32(1.0 / math.sqrt(D))
    wp = _SlabPacker(jnp.bfloat16)
    pp = _SlabPacker(jnp.float32)

    def add_attn(pfx, p):
        wp.add(pfx + "_wq", p["wq"] * scale, rows=LANE)
        wp.add(pfx + "_wk", p["wk"], rows=LANE)
        wp.add(pfx + "_wv", p["wv"], rows=LANE)
        wp.add(pfx + "_wo", p["wo"], rows=LANE)
        pp.add(pfx + "_bq", p["bq"] * scale)
        pp.add(pfx + "_bk", p["bk"])
        pp.add(pfx + "_bv", p["bv"])
        pp.add(pfx + "_bo", p["bo"])
        pp.add(pfx + "_ln_g", p["ln_g"])
        pp.add(pfx + "_ln_b", p["ln_b"])

    def add_ffn(pfx, p):
        wp.add(pfx + "_w1", p["w1"], rows=LANE)
        wp.add(pfx + "_w2", p["w2"], rows=LANE)
        pp.add(pfx + "_b1", p["b1"])
        pp.add(pfx + "_b2", p["b2"])
        pp.add(pfx + "_ln_g", p["ln_g"])
        pp.add(pfx + "_ln_b", p["ln_b"])

    for i, layer in enumerate(params["enc_layers"]):
        add_attn(f"enc{i}_sa", layer["sa"])
        add_ffn(f"enc{i}_ff", layer["ff"])
    for i, layer in enumerate(params["dec_layers"]):
        add_attn(f"dec{i}_sa", layer["sa"])
        add_attn(f"dec{i}_ca", layer["ca"])
        add_ffn(f"dec{i}_ff", layer["ff"])
    pp.add("concepts", params["concept_embeds"], rows=T_pad)

    w_slab, woff = wp.finish()
    p_slab, poff = pp.finish()
    return w_slab, p_slab, woff, poff


# ---------------------------------------------------------------------------
# Full TransformerNet forward: one pallas_call, grid over batch
# ---------------------------------------------------------------------------
def transformer_net_forward(x, params):
    B, S, D = x.shape
    T = params["concept_embeds"].shape[0]
    T_pad = _round_up(T, SUB)
    num_layers = len(params["enc_layers"])
    FFW = params["enc_layers"][0]["ff"]["w1"].shape[1]
    # TODO(synk): for D or FFW > 128 the feature dim must itself be tiled.
    assert D <= LANE and FFW <= LANE and S % SUB == 0

    w_slab, p_slab, woff, poff = pack_params(params, D, T_pad)

    # pad input features to the 128-lane carry width (zeros in lanes D:128)
    x_pad = jnp.pad(x.astype(jnp.float32), ((0, 0), (0, 0), (0, LANE - D)))

    kernel = make_fused_kernel(num_layers, S, T, T_pad, D, woff, poff)

    # ---- VMEM budget guard for the all-resident design ----
    def _nbytes(a):
        return a.size * a.dtype.itemsize
    resident_bytes = (2 * (_nbytes(w_slab) + _nbytes(p_slab))
                      + 4 * (S + T_pad) * LANE * 4 + (2 << 20))
    vmem_limit = None
    if resident_bytes > 24 * (1 << 20):
        # TODO(synk): beyond ~half of v7x VMEM, switch to a per-layer streamed
        # variant (weights in pl.ANY/HBM + pltpu.emit_pipeline).
        vmem_limit = int(min(resident_bytes * 2, 100 * (1 << 20)))

    out_pad = pl.pallas_call(
        kernel,
        out_shape=jax.ShapeDtypeStruct((B, T_pad, LANE), x.dtype),
        grid=(B,),
        in_specs=[
            pl.BlockSpec((None, S, LANE), lambda b: (b, 0, 0)),
            pl.BlockSpec(w_slab.shape, lambda b: (0, 0)),
            pl.BlockSpec(p_slab.shape, lambda b: (0, 0)),
        ],
        out_specs=pl.BlockSpec((None, T_pad, LANE), lambda b: (b, 0, 0)),
        compiler_params=pltpu.CompilerParams(
            dimension_semantics=("parallel",),
            vmem_limit_bytes=vmem_limit),
    )(x_pad, w_slab, p_slab)

    # drop padded concept rows and padded feature lanes
    return out_pad[:, :T, :D]


if __name__ == "__main__":
    # small shapes consistent with the module:
    #   input_dim (d_model) = 32, ffw_dim = 64, nhead = 1, num_layers = 1,
    #   n_decoder_concepts = 10, seq len = 8, batch = 2
    B, S, D = 2, 8, 32
    FFW, T, NUM_LAYERS = 64, 10, 1

    key = jax.random.PRNGKey(0)
    k_x, k_p = jax.random.split(key)
    x = jax.random.normal(k_x, (B, S, D), jnp.float32)
    params = init_transformer_net_params(k_p, D, FFW, T, NUM_LAYERS)

    out = transformer_net_forward(x, params)
    out = jax.block_until_ready(out)
    assert out.shape == (B, T, D), out.shape
    assert bool(jnp.all(jnp.isfinite(out)))
    print("KERNEL_OK")
</pallas_src>

<mosaic_0001>
module attributes {stable_mosaic.version = 11 : i64} {
  func.func @kernel(%arg0: i32, %arg1: memref<1x8x128xf32, #tpu.memory_space<vmem>>, %arg2: memref<2048x128xbf16, #tpu.memory_space<vmem>>, %arg3: memref<224x128xf32, #tpu.memory_space<vmem>>, %arg4: memref<1x16x128xf32, #tpu.memory_space<vmem>>) attributes {dimension_semantics = [#tpu.dimension_semantics<parallel>], iteration_bounds = array<i64: 2>, scalar_prefetch = 0 : i64, scratch_operands = 0 : i64, tpu.core_type = #tpu.core_type<tc>, window_params = [{transform_indices = @transform_0, window_bounds = array<i64: 1, 8, 128>}, {pipeline_mode = #tpu.pipeline_mode<synchronous>, transform_indices = @transform_1, window_bounds = array<i64: 2048, 128>}, {pipeline_mode = #tpu.pipeline_mode<synchronous>, transform_indices = @transform_2, window_bounds = array<i64: 224, 128>}, {transform_indices = @transform_3, window_bounds = array<i64: 1, 16, 128>}]} {
    %0 = tpu.iota {dimensions = array<i32: 1>} : vector<1x128xi32>
    %c32_i32 = arith.constant 32 : i32
    %1 = vector.broadcast %c32_i32 : i32 to vector<1x128xi32>
    %2 = arith.cmpi slt, %0, %1 : vector<1x128xi32>
    %3 = arith.extui %2 : vector<1x128xi1> to vector<1x128xi32>
    %4 = arith.sitofp %3 : vector<1x128xi32> to vector<1x128xf32>
    %c0 = arith.constant 0 : index
    %c0_0 = arith.constant 0 : index
    %c0_1 = arith.constant 0 : index
    %5 = vector.load %arg1[%c0, %c0_0, %c0_1] : memref<1x8x128xf32, #tpu.memory_space<vmem>>, vector<1x8x128xf32>
    %6 = vector.shape_cast %5 : vector<1x8x128xf32> to vector<8x128xf32>
    %7 = arith.truncf %6 : vector<8x128xf32> to vector<8x128xbf16>
    %c0_2 = arith.constant 0 : index
    %c0_3 = arith.constant 0 : index
    %8 = vector.load %arg2[%c0_2, %c0_3] : memref<2048x128xbf16, #tpu.memory_space<vmem>>, vector<128x128xbf16>
    %cst = arith.constant dense<0.000000e+00> : vector<8x128xf32>
    %9 = tpu.matmul %7, %8, %cst {dimension_numbers = #tpu.dot_dimension_numbers<[1], [0], [0], [1], [0, 0, 1, 1], [], []>} : vector<8x128xbf16>, vector<128x128xbf16>, vector<8x128xf32> -> vector<8x128xf32>
    %c0_4 = arith.constant 0 : index
    %c0_5 = arith.constant 0 : index
    %10 = vector.load %arg3[%c0_4, %c0_5] : memref<224x128xf32, #tpu.memory_space<vmem>>, vector<1x128xf32>
    %11 = vector.broadcast %10 : vector<1x128xf32> to vector<8x128xf32>
    %12 = arith.addf %9, %11 : vector<8x128xf32>
    %13 = arith.truncf %6 : vector<8x128xf32> to vector<8x128xbf16>
    %c128 = arith.constant 128 : index
    %c0_6 = arith.constant 0 : index
    %14 = vector.load %arg2[%c128, %c0_6] : memref<2048x128xbf16, #tpu.memory_space<vmem>>, vector<128x128xbf16>
    %cst_7 = arith.constant dense<0.000000e+00> : vector<8x128xf32>
    %15 = tpu.matmul %13, %14, %cst_7 {dimension_numbers = #tpu.dot_dimension_numbers<[1], [0], [0], [1], [0, 0, 1, 1], [], []>} : vector<8x128xbf16>, vector<128x128xbf16>, vector<8x128xf32> -> vector<8x128xf32>
    %c8 = arith.constant 8 : index
    %c0_8 = arith.constant 0 : index
    %16 = vector.load %arg3[%c8, %c0_8] : memref<224x128xf32, #tpu.memory_space<vmem>>, vector<1x128xf32>
    %17 = vector.broadcast %16 : vector<1x128xf32> to vector<8x128xf32>
    %18 = arith.addf %15, %17 : vector<8x128xf32>
    %19 = arith.truncf %6 : vector<8x128xf32> to vector<8x128xbf16>
    %c256 = arith.constant 256 : index
    %c0_9 = arith.constant 0 : index
    %20 = vector.load %arg2[%c256, %c0_9] : memref<2048x128xbf16, #tpu.memory_space<vmem>>, vector<128x128xbf16>
    %cst_10 = arith.constant dense<0.000000e+00> : vector<8x128xf32>
    %21 = tpu.matmul %19, %20, %cst_10 {dimension_numbers = #tpu.dot_dimension_numbers<[1], [0], [0], [1], [0, 0, 1, 1], [], []>} : vector<8x128xbf16>, vector<128x128xbf16>, vector<8x128xf32> -> vector<8x128xf32>
    %c16 = arith.constant 16 : index
    %c0_11 = arith.constant 0 : index
    %22 = vector.load %arg3[%c16, %c0_11] : memref<224x128xf32, #tpu.memory_space<vmem>>, vector<1x128xf32>
    %23 = vector.broadcast %22 : vector<1x128xf32> to vector<8x128xf32>
    %24 = arith.addf %21, %23 : vector<8x128xf32>
    %25 = arith.truncf %12 : vector<8x128xf32> to vector<8x128xbf16>
    %26 = arith.truncf %18 : vector<8x128xf32> to vector<8x128xbf16>
    %cst_12 = arith.constant dense<0.000000e+00> : vector<8x8xf32>
    %27 = tpu.matmul %25, %26, %cst_12 {dimension_numbers = #tpu.dot_dimension_numbers<[1], [1], [0], [0], [0, 0, 1, 0], [], []>} : vector<8x128xbf16>, vector<8x128xbf16>, vector<8x8xf32> -> vector<8x8xf32>
    %cst_13 = arith.constant dense<0xFF800000> : vector<8xf32>
    %28 = vector.multi_reduction <maximumf>, %27, %cst_13 [1] : vector<8x8xf32> to vector<8xf32>
    %29 = vector.shape_cast %28 : vector<8xf32> to vector<8x1xf32>
    %30 = vector.broadcast %29 : vector<8x1xf32> to vector<8x8xf32>
    %31 = arith.subf %27, %30 : vector<8x8xf32>
    %32 = math.exp %31 : vector<8x8xf32>
    %cst_14 = arith.constant dense<0.000000e+00> : vector<8xf32>
    %33 = vector.multi_reduction <add>, %32, %cst_14 [1] : vector<8x8xf32> to vector<8xf32>
    %34 = vector.shape_cast %33 : vector<8xf32> to vector<8x1xf32>
    %35 = tpu.reciprocal %34 {approx = true} : vector<8x1xf32> -> vector<8x1xf32>
    %36 = vector.broadcast %35 : vector<8x1xf32> to vector<8x8xf32>
    %37 = arith.mulf %32, %36 : vector<8x8xf32>
    %38 = arith.truncf %37 : vector<8x8xf32> to vector<8x8xbf16>
    %39 = arith.truncf %24 : vector<8x128xf32> to vector<8x128xbf16>
    %cst_15 = arith.constant dense<0.000000e+00> : vector<8x128xf32>
    %40 = tpu.matmul %38, %39, %cst_15 {dimension_numbers = #tpu.dot_dimension_numbers<[1], [0], [0], [1], [0, 0, 1, 1], [], []>} : vector<8x8xbf16>, vector<8x128xbf16>, vector<8x128xf32> -> vector<8x128xf32>
    %41 = arith.truncf %40 : vector<8x128xf32> to vector<8x128xbf16>
    %c384 = arith.constant 384 : index
    %c0_16 = arith.constant 0 : index
    %42 = vector.load %arg2[%c384, %c0_16] : memref<2048x128xbf16, #tpu.memory_space<vmem>>, vector<128x128xbf16>
    %cst_17 = arith.constant dense<0.000000e+00> : vector<8x128xf32>
    %43 = tpu.matmul %41, %42, %cst_17 {dimension_numbers = #tpu.dot_dimension_numbers<[1], [0], [0], [1], [0, 0, 1, 1], [], []>} : vector<8x128xbf16>, vector<128x128xbf16>, vector<8x128xf32> -> vector<8x128xf32>
    %c24 = arith.constant 24 : index
    %c0_18 = arith.constant 0 : index
    %44 = vector.load %arg3[%c24, %c0_18] : memref<224x128xf32, #tpu.memory_space<vmem>>, vector<1x128xf32>
    %45 = vector.broadcast %44 : vector<1x128xf32> to vector<8x128xf32>
    %46 = arith.addf %43, %45 : vector<8x128xf32>
    %47 = arith.addf %6, %46 : vector<8x128xf32>
    %cst_19 = arith.constant dense<0.000000e+00> : vector<8xf32>
    %48 = vector.multi_reduction <add>, %47, %cst_19 [1] : vector<8x128xf32> to vector<8xf32>
    %49 = vector.shape_cast %48 : vector<8xf32> to vector<8x1xf32>
    %cst_20 = arith.constant 3.125000e-02 : f32
    %50 = vector.broadcast %cst_20 : f32 to vector<8x1xf32>
    %51 = arith.mulf %49, %50 : vector<8x1xf32>
    %52 = vector.broadcast %51 : vector<8x1xf32> to vector<8x128xf32>
    %53 = arith.subf %47, %52 : vector<8x128xf32>
    %54 = vector.broadcast %4 : vector<1x128xf32> to vector<8x128xf32>
    %55 = arith.mulf %53, %54 : vector<8x128xf32>
    %56 = arith.mulf %55, %55 : vector<8x128xf32>
    %cst_21 = arith.constant dense<0.000000e+00> : vector<8xf32>
    %57 = vector.multi_reduction <add>, %56, %cst_21 [1] : vector<8x128xf32> to vector<8xf32>
    %58 = vector.shape_cast %57 : vector<8xf32> to vector<8x1xf32>
    %cst_22 = arith.constant 3.125000e-02 : f32
    %59 = vector.broadcast %cst_22 : f32 to vector<8x1xf32>
    %60 = arith.mulf %58, %59 : vector<8x1xf32>
    %cst_23 = arith.constant 9.99999974E-6 : f32
    %61 = vector.broadcast %cst_23 : f32 to vector<8x1xf32>
    %62 = arith.addf %60, %61 : vector<8x1xf32>
    %63 = math.rsqrt %62 : vector<8x1xf32>
    %64 = vector.broadcast %63 : vector<8x1xf32> to vector<8x128xf32>
    %65 = arith.mulf %55, %64 : vector<8x128xf32>
    %c32 = arith.constant 32 : index
    %c0_24 = arith.constant 0 : index
    %66 = vector.load %arg3[%c32, %c0_24] : memref<224x128xf32, #tpu.memory_space<vmem>>, vector<1x128xf32>
    %67 = vector.broadcast %66 : vector<1x128xf32> to vector<8x128xf32>
    %68 = arith.mulf %65, %67 : vector<8x128xf32>
    %c40 = arith.constant 40 : index
    %c0_25 = arith.constant 0 : index
    %69 = vector.load %arg3[%c40, %c0_25] : memref<224x128xf32, #tpu.memory_space<vmem>>, vector<1x128xf32>
    %70 = vector.broadcast %69 : vector<1x128xf32> to vector<8x128xf32>
    %71 = arith.addf %68, %70 : vector<8x128xf32>
    %72 = arith.truncf %71 : vector<8x128xf32> to vector<8x128xbf16>
    %c512 = arith.constant 512 : index
    %c0_26 = arith.constant 0 : index
    %73 = vector.load %arg2[%c512, %c0_26] : memref<2048x128xbf16, #tpu.memory_space<vmem>>, vector<128x128xbf16>
    %cst_27 = arith.constant dense<0.000000e+00> : vector<8x128xf32>
    %74 = tpu.matmul %72, %73, %cst_27 {dimension_numbers = #tpu.dot_dimension_numbers<[1], [0], [0], [1], [0, 0, 1, 1], [], []>} : vector<8x128xbf16>, vector<128x128xbf16>, vector<8x128xf32> -> vector<8x128xf32>
    %c48 = arith.constant 48 : index
    %c0_28 = arith.constant 0 : index
    %75 = vector.load %arg3[%c48, %c0_28] : memref<224x128xf32, #tpu.memory_space<vmem>>, vector<1x128xf32>
    %76 = vector.broadcast %75 : vector<1x128xf32> to vector<8x128xf32>
    %77 = arith.addf %74, %76 : vector<8x128xf32>
    %cst_29 = arith.constant 0.000000e+00 : f32
    %78 = vector.broadcast %cst_29 : f32 to vector<8x128xf32>
    %79 = arith.maximumf %77, %78 : vector<8x128xf32>
    %80 = arith.truncf %79 : vector<8x128xf32> to vector<8x128xbf16>
    %c640 = arith.constant 640 : index
    %c0_30 = arith.constant 0 : index
    %81 = vector.load %arg2[%c640, %c0_30] : memref<2048x128xbf16, #tpu.memory_space<vmem>>, vector<128x128xbf16>
    %cst_31 = arith.constant dense<0.000000e+00> : vector<8x128xf32>
    %82 = tpu.matmul %80, %81, %cst_31 {dimension_numbers = #tpu.dot_dimension_numbers<[1], [0], [0], [1], [0, 0, 1, 1], [], []>} : vector<8x128xbf16>, vector<128x128xbf16>, vector<8x128xf32> -> vector<8x128xf32>
    %c56 = arith.constant 56 : index
    %c0_32 = arith.constant 0 : index
    %83 = vector.load %arg3[%c56, %c0_32] : memref<224x128xf32, #tpu.memory_space<vmem>>, vector<1x128xf32>
    %84 = vector.broadcast %83 : vector<1x128xf32> to vector<8x128xf32>
    %85 = arith.addf %82, %84 : vector<8x128xf32>
    %86 = arith.addf %71, %85 : vector<8x128xf32>
    %cst_33 = arith.constant dense<0.000000e+00> : vector<8xf32>
    %87 = vector.multi_reduction <add>, %86, %cst_33 [1] : vector<8x128xf32> to vector<8xf32>
    %88 = vector.shape_cast %87 : vector<8xf32> to vector<8x1xf32>
    %cst_34 = arith.constant 3.125000e-02 : f32
    %89 = vector.broadcast %cst_34 : f32 to vector<8x1xf32>
    %90 = arith.mulf %88, %89 : vector<8x1xf32>
    %91 = vector.broadcast %90 : vector<8x1xf32> to vector<8x128xf32>
    %92 = arith.subf %86, %91 : vector<8x128xf32>
    %93 = vector.broadcast %4 : vector<1x128xf32> to vector<8x128xf32>
    %94 = arith.mulf %92, %93 : vector<8x128xf32>
    %95 = arith.mulf %94, %94 : vector<8x128xf32>
    %cst_35 = arith.constant dense<0.000000e+00> : vector<8xf32>
    %96 = vector.multi_reduction <add>, %95, %cst_35 [1] : vector<8x128xf32> to vector<8xf32>
    %97 = vector.shape_cast %96 : vector<8xf32> to vector<8x1xf32>
    %cst_36 = arith.constant 3.125000e-02 : f32
    %98 = vector.broadcast %cst_36 : f32 to vector<8x1xf32>
    %99 = arith.mulf %97, %98 : vector<8x1xf32>
    %cst_37 = arith.constant 9.99999974E-6 : f32
    %100 = vector.broadcast %cst_37 : f32 to vector<8x1xf32>
    %101 = arith.addf %99, %100 : vector<8x1xf32>
    %102 = math.rsqrt %101 : vector<8x1xf32>
    %103 = vector.broadcast %102 : vector<8x1xf32> to vector<8x128xf32>
    %104 = arith.mulf %94, %103 : vector<8x128xf32>
    %c64 = arith.constant 64 : index
    %c0_38 = arith.constant 0 : index
    %105 = vector.load %arg3[%c64, %c0_38] : memref<224x128xf32, #tpu.memory_space<vmem>>, vector<1x128xf32>
    %106 = vector.broadcast %105 : vector<1x128xf32> to vector<8x128xf32>
    %107 = arith.mulf %104, %106 : vector<8x128xf32>
    %c72 = arith.constant 72 : index
    %c0_39 = arith.constant 0 : index
    %108 = vector.load %arg3[%c72, %c0_39] : memref<224x128xf32, #tpu.memory_space<vmem>>, vector<1x128xf32>
    %109 = vector.broadcast %108 : vector<1x128xf32> to vector<8x128xf32>
    %110 = arith.addf %107, %109 : vector<8x128xf32>
    %111 = tpu.iota {dimensions = array<i32: 1>} : vector<1x16xi32>
    %c10_i32 = arith.constant 10 : i32
    %112 = vector.broadcast %c10_i32 : i32 to vector<1x16xi32>
    %113 = arith.cmpi slt, %111, %112 : vector<1x16xi32>
    %cst_40 = arith.constant 0.000000e+00 : f32
    %cst_41 = arith.constant -1.000000e+30 : f32
    %114 = vector.broadcast %cst_40 : f32 to vector<1x16xf32>
    %115 = vector.broadcast %cst_41 : f32 to vector<1x16xf32>
    %116 = arith.select %113, %114, %115 : vector<1x16xi1>, vector<1x16xf32>
    %c208 = arith.constant 208 : index
    %c0_42 = arith.constant 0 : index
    %117 = vector.load %arg3[%c208, %c0_42] : memref<224x128xf32, #tpu.memory_space<vmem>>, vector<16x128xf32>
    %118 = arith.truncf %117 : vector<16x128xf32> to vector<16x128xbf16>
    %c768 = arith.constant 768 : index
    %c0_43 = arith.constant 0 : index
    %119 = vector.load %arg2[%c768, %c0_43] : memref<2048x128xbf16, #tpu.memory_space<vmem>>, vector<128x128xbf16>
    %cst_44 = arith.constant dense<0.000000e+00> : vector<16x128xf32>
    %120 = tpu.matmul %118, %119, %cst_44 {dimension_numbers = #tpu.dot_dimension_numbers<[1], [0], [0], [1], [0, 0, 1, 1], [], []>} : vector<16x128xbf16>, vector<128x128xbf16>, vector<16x128xf32> -> vector<16x128xf32>
    %c80 = arith.constant 80 : index
    %c0_45 = arith.constant 0 : index
    %121 = vector.load %arg3[%c80, %c0_45] : memref<224x128xf32, #tpu.memory_space<vmem>>, vector<1x128xf32>
    %122 = vector.broadcast %121 : vector<1x128xf32> to vector<16x128xf32>
    %123 = arith.addf %120, %122 : vector<16x128xf32>
    %124 = arith.truncf %117 : vector<16x128xf32> to vector<16x128xbf16>
    %c896 = arith.constant 896 : index
    %c0_46 = arith.constant 0 : index
    %125 = vector.load %arg2[%c896, %c0_46] : memref<2048x128xbf16, #tpu.memory_space<vmem>>, vector<128x128xbf16>
    %cst_47 = arith.constant dense<0.000000e+00> : vector<16x128xf32>
    %126 = tpu.matmul %124, %125, %cst_47 {dimension_numbers = #tpu.dot_dimension_numbers<[1], [0], [0], [1], [0, 0, 1, 1], [], []>} : vector<16x128xbf16>, vector<128x128xbf16>, vector<16x128xf32> -> vector<16x128xf32>
    %c88 = arith.constant 88 : index
    %c0_48 = arith.constant 0 : index
    %127 = vector.load %arg3[%c88, %c0_48] : memref<224x128xf32, #tpu.memory_space<vmem>>, vector<1x128xf32>
    %128 = vector.broadcast %127 : vector<1x128xf32> to vector<16x128xf32>
    %129 = arith.addf %126, %128 : vector<16x128xf32>
    %130 = arith.truncf %117 : vector<16x128xf32> to vector<16x128xbf16>
    %c1024 = arith.constant 1024 : index
    %c0_49 = arith.constant 0 : index
    %131 = vector.load %arg2[%c1024, %c0_49] : memref<2048x128xbf16, #tpu.memory_space<vmem>>, vector<128x128xbf16>
    %cst_50 = arith.constant dense<0.000000e+00> : vector<16x128xf32>
    %132 = tpu.matmul %130, %131, %cst_50 {dimension_numbers = #tpu.dot_dimension_numbers<[1], [0], [0], [1], [0, 0, 1, 1], [], []>} : vector<16x128xbf16>, vector<128x128xbf16>, vector<16x128xf32> -> vector<16x128xf32>
    %c96 = arith.constant 96 : index
    %c0_51 = arith.constant 0 : index
    %133 = vector.load %arg3[%c96, %c0_51] : memref<224x128xf32, #tpu.memory_space<vmem>>, vector<1x128xf32>
    %134 = vector.broadcast %133 : vector<1x128xf32> to vector<16x128xf32>
    %135 = arith.addf %132, %134 : vector<16x128xf32>
    %136 = arith.truncf %123 : vector<16x128xf32> to vector<16x128xbf16>
    %137 = arith.truncf %129 : vector<16x128xf32> to vector<16x128xbf16>
    %cst_52 = arith.constant dense<0.000000e+00> : vector<16x16xf32>
    %138 = tpu.matmul %136, %137, %cst_52 {dimension_numbers = #tpu.dot_dimension_numbers<[1], [1], [0], [0], [0, 0, 1, 0], [], []>} : vector<16x128xbf16>, vector<16x128xbf16>, vector<16x16xf32> -> vector<16x16xf32>
    %139 = vector.broadcast %116 : vector<1x16xf32> to vector<16x16xf32>
    %140 = arith.addf %138, %139 : vector<16x16xf32>
    %cst_53 = arith.constant dense<0xFF800000> : vector<16xf32>
    %141 = vector.multi_reduction <maximumf>, %140, %cst_53 [1] : vector<16x16xf32> to vector<16xf32>
    %142 = vector.shape_cast %141 : vector<16xf32> to vector<16x1xf32>
    %143 = vector.broadcast %142 : vector<16x1xf32> to vector<16x16xf32>
    %144 = arith.subf %140, %143 : vector<16x16xf32>
    %145 = math.exp %144 : vector<16x16xf32>
    %cst_54 = arith.constant dense<0.000000e+00> : vector<16xf32>
    %146 = vector.multi_reduction <add>, %145, %cst_54 [1] : vector<16x16xf32> to vector<16xf32>
    %147 = vector.shape_cast %146 : vector<16xf32> to vector<16x1xf32>
    %148 = tpu.reciprocal %147 {approx = true} : vector<16x1xf32> -> vector<16x1xf32>
    %149 = vector.broadcast %148 : vector<16x1xf32> to vector<16x16xf32>
    %150 = arith.mulf %145, %149 : vector<16x16xf32>
    %151 = arith.truncf %150 : vector<16x16xf32> to vector<16x16xbf16>
    %152 = arith.truncf %135 : vector<16x128xf32> to vector<16x128xbf16>
    %cst_55 = arith.constant dense<0.000000e+00> : vector<16x128xf32>
    %153 = tpu.matmul %151, %152, %cst_55 {dimension_numbers = #tpu.dot_dimension_numbers<[1], [0], [0], [1], [0, 0, 1, 1], [], []>} : vector<16x16xbf16>, vector<16x128xbf16>, vector<16x128xf32> -> vector<16x128xf32>
    %154 = arith.truncf %153 : vector<16x128xf32> to vector<16x128xbf16>
    %c1152 = arith.constant 1152 : index
    %c0_56 = arith.constant 0 : index
    %155 = vector.load %arg2[%c1152, %c0_56] : memref<2048x128xbf16, #tpu.memory_space<vmem>>, vector<128x128xbf16>
    %cst_57 = arith.constant dense<0.000000e+00> : vector<16x128xf32>
    %156 = tpu.matmul %154, %155, %cst_57 {dimension_numbers = #tpu.dot_dimension_numbers<[1], [0], [0], [1], [0, 0, 1, 1], [], []>} : vector<16x128xbf16>, vector<128x128xbf16>, vector<16x128xf32> -> vector<16x128xf32>
    %c104 = arith.constant 104 : index
    %c0_58 = arith.constant 0 : index
    %157 = vector.load %arg3[%c104, %c0_58] : memref<224x128xf32, #tpu.memory_space<vmem>>, vector<1x128xf32>
    %158 = vector.broadcast %157 : vector<1x128xf32> to vector<16x128xf32>
    %159 = arith.addf %156, %158 : vector<16x128xf32>
    %160 = arith.addf %117, %159 : vector<16x128xf32>
    %cst_59 = arith.constant dense<0.000000e+00> : vector<16xf32>
    %161 = vector.multi_reduction <add>, %160, %cst_59 [1] : vector<16x128xf32> to vector<16xf32>
    %162 = vector.shape_cast %161 : vector<16xf32> to vector<16x1xf32>
    %cst_60 = arith.constant 3.125000e-02 : f32
    %163 = vector.broadcast %cst_60 : f32 to vector<16x1xf32>
    %164 = arith.mulf %162, %163 : vector<16x1xf32>
    %165 = vector.broadcast %164 : vector<16x1xf32> to vector<16x128xf32>
    %166 = arith.subf %160, %165 : vector<16x128xf32>
    %167 = vector.broadcast %4 : vector<1x128xf32> to vector<16x128xf32>
    %168 = arith.mulf %166, %167 : vector<16x128xf32>
    %169 = arith.mulf %168, %168 : vector<16x128xf32>
    %cst_61 = arith.constant dense<0.000000e+00> : vector<16xf32>
    %170 = vector.multi_reduction <add>, %169, %cst_61 [1] : vector<16x128xf32> to vector<16xf32>
    %171 = vector.shape_cast %170 : vector<16xf32> to vector<16x1xf32>
    %cst_62 = arith.constant 3.125000e-02 : f32
    %172 = vector.broadcast %cst_62 : f32 to vector<16x1xf32>
    %173 = arith.mulf %171, %172 : vector<16x1xf32>
    %cst_63 = arith.constant 9.99999974E-6 : f32
    %174 = vector.broadcast %cst_63 : f32 to vector<16x1xf32>
    %175 = arith.addf %173, %174 : vector<16x1xf32>
    %176 = math.rsqrt %175 : vector<16x1xf32>
    %177 = vector.broadcast %176 : vector<16x1xf32> to vector<16x128xf32>
    %178 = arith.mulf %168, %177 : vector<16x128xf32>
    %c112 = arith.constant 112 : index
    %c0_64 = arith.constant 0 : index
    %179 = vector.load %arg3[%c112, %c0_64] : memref<224x128xf32, #tpu.memory_space<vmem>>, vector<1x128xf32>
    %180 = vector.broadcast %179 : vector<1x128xf32> to vector<16x128xf32>
    %181 = arith.mulf %178, %180 : vector<16x128xf32>
    %c120 = arith.constant 120 : index
    %c0_65 = arith.constant 0 : index
    %182 = vector.load %arg3[%c120, %c0_65] : memref<224x128xf32, #tpu.memory_space<vmem>>, vector<1x128xf32>
    %183 = vector.broadcast %182 : vector<1x128xf32> to vector<16x128xf32>
    %184 = arith.addf %181, %183 : vector<16x128xf32>
    %185 = arith.truncf %184 : vector<16x128xf32> to vector<16x128xbf16>
    %c1280 = arith.constant 1280 : index
    %c0_66 = arith.constant 0 : index
    %186 = vector.load %arg2[%c1280, %c0_66] : memref<2048x128xbf16, #tpu.memory_space<vmem>>, vector<128x128xbf16>
    %cst_67 = arith.constant dense<0.000000e+00> : vector<16x128xf32>
    %187 = tpu.matmul %185, %186, %cst_67 {dimension_numbers = #tpu.dot_dimension_numbers<[1], [0], [0], [1], [0, 0, 1, 1], [], []>} : vector<16x128xbf16>, vector<128x128xbf16>, vector<16x128xf32> -> vector<16x128xf32>
    %c128_68 = arith.constant 128 : index
    %c0_69 = arith.constant 0 : index
    %188 = vector.load %arg3[%c128_68, %c0_69] : memref<224x128xf32, #tpu.memory_space<vmem>>, vector<1x128xf32>
    %189 = vector.broadcast %188 : vector<1x128xf32> to vector<16x128xf32>
    %190 = arith.addf %187, %189 : vector<16x128xf32>
    %191 = arith.truncf %110 : vector<8x128xf32> to vector<8x128xbf16>
    %c1408 = arith.constant 1408 : index
    %c0_70 = arith.constant 0 : index
    %192 = vector.load %arg2[%c1408, %c0_70] : memref<2048x128xbf16, #tpu.memory_space<vmem>>, vector<128x128xbf16>
    %cst_71 = arith.constant dense<0.000000e+00> : vector<8x128xf32>
    %193 = tpu.matmul %191, %192, %cst_71 {dimension_numbers = #tpu.dot_dimension_numbers<[1], [0], [0], [1], [0, 0, 1, 1], [], []>} : vector<8x128xbf16>, vector<128x128xbf16>, vector<8x128xf32> -> vector<8x128xf32>
    %c136 = arith.constant 136 : index
    %c0_72 = arith.constant 0 : index
    %194 = vector.load %arg3[%c136, %c0_72] : memref<224x128xf32, #tpu.memory_space<vmem>>, vector<1x128xf32>
    %195 = vector.broadcast %194 : vector<1x128xf32> to vector<8x128xf32>
    %196 = arith.addf %193, %195 : vector<8x128xf32>
    %197 = arith.truncf %110 : vector<8x128xf32> to vector<8x128xbf16>
    %c1536 = arith.constant 1536 : index
    %c0_73 = arith.constant 0 : index
    %198 = vector.load %arg2[%c1536, %c0_73] : memref<2048x128xbf16, #tpu.memory_space<vmem>>, vector<128x128xbf16>
    %cst_74 = arith.constant dense<0.000000e+00> : vector<8x128xf32>
    %199 = tpu.matmul %197, %198, %cst_74 {dimension_numbers = #tpu.dot_dimension_numbers<[1], [0], [0], [1], [0, 0, 1, 1], [], []>} : vector<8x128xbf16>, vector<128x128xbf16>, vector<8x128xf32> -> vector<8x128xf32>
    %c144 = arith.constant 144 : index
    %c0_75 = arith.constant 0 : index
    %200 = vector.load %arg3[%c144, %c0_75] : memref<224x128xf32, #tpu.memory_space<vmem>>, vector<1x128xf32>
    %201 = vector.broadcast %200 : vector<1x128xf32> to vector<8x128xf32>
    %202 = arith.addf %199, %201 : vector<8x128xf32>
    %203 = arith.truncf %190 : vector<16x128xf32> to vector<16x128xbf16>
    %204 = arith.truncf %196 : vector<8x128xf32> to vector<8x128xbf16>
    %cst_76 = arith.constant dense<0.000000e+00> : vector<16x8xf32>
    %205 = tpu.matmul %203, %204, %cst_76 {dimension_numbers = #tpu.dot_dimension_numbers<[1], [1], [0], [0], [0, 0, 1, 0], [], []>} : vector<16x128xbf16>, vector<8x128xbf16>, vector<16x8xf32> -> vector<16x8xf32>
    %cst_77 = arith.constant dense<0xFF800000> : vector<16xf32>
    %206 = vector.multi_reduction <maximumf>, %205, %cst_77 [1] : vector<16x8xf32> to vector<16xf32>
    %207 = vector.shape_cast %206 : vector<16xf32> to vector<16x1xf32>
    %208 = vector.broadcast %207 : vector<16x1xf32> to vector<16x8xf32>
    %209 = arith.subf %205, %208 : vector<16x8xf32>
    %210 = math.exp %209 : vector<16x8xf32>
    %cst_78 = arith.constant dense<0.000000e+00> : vector<16xf32>
    %211 = vector.multi_reduction <add>, %210, %cst_78 [1] : vector<16x8xf32> to vector<16xf32>
    %212 = vector.shape_cast %211 : vector<16xf32> to vector<16x1xf32>
    %213 = tpu.reciprocal %212 {approx = true} : vector<16x1xf32> -> vector<16x1xf32>
    %214 = vector.broadcast %213 : vector<16x1xf32> to vector<16x8xf32>
    %215 = arith.mulf %210, %214 : vector<16x8xf32>
    %216 = arith.truncf %215 : vector<16x8xf32> to vector<16x8xbf16>
    %217 = arith.truncf %202 : vector<8x128xf32> to vector<8x128xbf16>
    %cst_79 = arith.constant dense<0.000000e+00> : vector<16x128xf32>
    %218 = tpu.matmul %216, %217, %cst_79 {dimension_numbers = #tpu.dot_dimension_numbers<[1], [0], [0], [1], [0, 0, 1, 1], [], []>} : vector<16x8xbf16>, vector<8x128xbf16>, vector<16x128xf32> -> vector<16x128xf32>
    %219 = arith.truncf %218 : vector<16x128xf32> to vector<16x128xbf16>
    %c1664 = arith.constant 1664 : index
    %c0_80 = arith.constant 0 : index
    %220 = vector.load %arg2[%c1664, %c0_80] : memref<2048x128xbf16, #tpu.memory_space<vmem>>, vector<128x128xbf16>
    %cst_81 = arith.constant dense<0.000000e+00> : vector<16x128xf32>
    %221 = tpu.matmul %219, %220, %cst_81 {dimension_numbers = #tpu.dot_dimension_numbers<[1], [0], [0], [1], [0, 0, 1, 1], [], []>} : vector<16x128xbf16>, vector<128x128xbf16>, vector<16x128xf32> -> vector<16x128xf32>
    %c152 = arith.constant 152 : index
    %c0_82 = arith.constant 0 : index
    %222 = vector.load %arg3[%c152, %c0_82] : memref<224x128xf32, #tpu.memory_space<vmem>>, vector<1x128xf32>
    %223 = vector.broadcast %222 : vector<1x128xf32> to vector<16x128xf32>
    %224 = arith.addf %221, %223 : vector<16x128xf32>
    %225 = arith.addf %184, %224 : vector<16x128xf32>
    %cst_83 = arith.constant dense<0.000000e+00> : vector<16xf32>
    %226 = vector.multi_reduction <add>, %225, %cst_83 [1] : vector<16x128xf32> to vector<16xf32>
    %227 = vector.shape_cast %226 : vector<16xf32> to vector<16x1xf32>
    %cst_84 = arith.constant 3.125000e-02 : f32
    %228 = vector.broadcast %cst_84 : f32 to vector<16x1xf32>
    %229 = arith.mulf %227, %228 : vector<16x1xf32>
    %230 = vector.broadcast %229 : vector<16x1xf32> to vector<16x128xf32>
    %231 = arith.subf %225, %230 : vector<16x128xf32>
    %232 = vector.broadcast %4 : vector<1x128xf32> to vector<16x128xf32>
    %233 = arith.mulf %231, %232 : vector<16x128xf32>
    %234 = arith.mulf %233, %233 : vector<16x128xf32>
    %cst_85 = arith.constant dense<0.000000e+00> : vector<16xf32>
    %235 = vector.multi_reduction <add>, %234, %cst_85 [1] : vector<16x128xf32> to vector<16xf32>
    %236 = vector.shape_cast %235 : vector<16xf32> to vector<16x1xf32>
    %cst_86 = arith.constant 3.125000e-02 : f32
    %237 = vector.broadcast %cst_86 : f32 to vector<16x1xf32>
    %238 = arith.mulf %236, %237 : vector<16x1xf32>
    %cst_87 = arith.constant 9.99999974E-6 : f32
    %239 = vector.broadcast %cst_87 : f32 to vector<16x1xf32>
    %240 = arith.addf %238, %239 : vector<16x1xf32>
    %241 = math.rsqrt %240 : vector<16x1xf32>
    %242 = vector.broadcast %241 : vector<16x1xf32> to vector<16x128xf32>
    %243 = arith.mulf %233, %242 : vector<16x128xf32>
    %c160 = arith.constant 160 : index
    %c0_88 = arith.constant 0 : index
    %244 = vector.load %arg3[%c160, %c0_88] : memref<224x128xf32, #tpu.memory_space<vmem>>, vector<1x128xf32>
    %245 = vector.broadcast %244 : vector<1x128xf32> to vector<16x128xf32>
    %246 = arith.mulf %243, %245 : vector<16x128xf32>
    %c168 = arith.constant 168 : index
    %c0_89 = arith.constant 0 : index
    %247 = vector.load %arg3[%c168, %c0_89] : memref<224x128xf32, #tpu.memory_space<vmem>>, vector<1x128xf32>
    %248 = vector.broadcast %247 : vector<1x128xf32> to vector<16x128xf32>
    %249 = arith.addf %246, %248 : vector<16x128xf32>
    %250 = arith.truncf %249 : vector<16x128xf32> to vector<16x128xbf16>
    %c1792 = arith.constant 1792 : index
    %c0_90 = arith.constant 0 : index
    %251 = vector.load %arg2[%c1792, %c0_90] : memref<2048x128xbf16, #tpu.memory_space<vmem>>, vector<128x128xbf16>
    %cst_91 = arith.constant dense<0.000000e+00> : vector<16x128xf32>
    %252 = tpu.matmul %250, %251, %cst_91 {dimension_numbers = #tpu.dot_dimension_numbers<[1], [0], [0], [1], [0, 0, 1, 1], [], []>} : vector<16x128xbf16>, vector<128x128xbf16>, vector<16x128xf32> -> vector<16x128xf32>
    %c176 = arith.constant 176 : index
    %c0_92 = arith.constant 0 : index
    %253 = vector.load %arg3[%c176, %c0_92] : memref<224x128xf32, #tpu.memory_space<vmem>>, vector<1x128xf32>
    %254 = vector.broadcast %253 : vector<1x128xf32> to vector<16x128xf32>
    %255 = arith.addf %252, %254 : vector<16x128xf32>
    %cst_93 = arith.constant 0.000000e+00 : f32
    %256 = vector.broadcast %cst_93 : f32 to vector<16x128xf32>
    %257 = arith.maximumf %255, %256 : vector<16x128xf32>
    %258 = arith.truncf %257 : vector<16x128xf32> to vector<16x128xbf16>
    %c1920 = arith.constant 1920 : index
    %c0_94 = arith.constant 0 : index
    %259 = vector.load %arg2[%c1920, %c0_94] : memref<2048x128xbf16, #tpu.memory_space<vmem>>, vector<128x128xbf16>
    %cst_95 = arith.constant dense<0.000000e+00> : vector<16x128xf32>
    %260 = tpu.matmul %258, %259, %cst_95 {dimension_numbers = #tpu.dot_dimension_numbers<[1], [0], [0], [1], [0, 0, 1, 1], [], []>} : vector<16x128xbf16>, vector<128x128xbf16>, vector<16x128xf32> -> vector<16x128xf32>
    %c184 = arith.constant 184 : index
    %c0_96 = arith.constant 0 : index
    %261 = vector.load %arg3[%c184, %c0_96] : memref<224x128xf32, #tpu.memory_space<vmem>>, vector<1x128xf32>
    %262 = vector.broadcast %261 : vector<1x128xf32> to vector<16x128xf32>
    %263 = arith.addf %260, %262 : vector<16x128xf32>
    %264 = arith.addf %249, %263 : vector<16x128xf32>
    %cst_97 = arith.constant dense<0.000000e+00> : vector<16xf32>
    %265 = vector.multi_reduction <add>, %264, %cst_97 [1] : vector<16x128xf32> to vector<16xf32>
    %266 = vector.shape_cast %265 : vector<16xf32> to vector<16x1xf32>
    %cst_98 = arith.constant 3.125000e-02 : f32
    %267 = vector.broadcast %cst_98 : f32 to vector<16x1xf32>
    %268 = arith.mulf %266, %267 : vector<16x1xf32>
    %269 = vector.broadcast %268 : vector<16x1xf32> to vector<16x128xf32>
    %270 = arith.subf %264, %269 : vector<16x128xf32>
    %271 = vector.broadcast %4 : vector<1x128xf32> to vector<16x128xf32>
    %272 = arith.mulf %270, %271 : vector<16x128xf32>
    %273 = arith.mulf %272, %272 : vector<16x128xf32>
    %cst_99 = arith.constant dense<0.000000e+00> : vector<16xf32>
    %274 = vector.multi_reduction <add>, %273, %cst_99 [1] : vector<16x128xf32> to vector<16xf32>
    %275 = vector.shape_cast %274 : vector<16xf32> to vector<16x1xf32>
    %cst_100 = arith.constant 3.125000e-02 : f32
    %276 = vector.broadcast %cst_100 : f32 to vector<16x1xf32>
    %277 = arith.mulf %275, %276 : vector<16x1xf32>
    %cst_101 = arith.constant 9.99999974E-6 : f32
    %278 = vector.broadcast %cst_101 : f32 to vector<16x1xf32>
    %279 = arith.addf %277, %278 : vector<16x1xf32>
    %280 = math.rsqrt %279 : vector<16x1xf32>
    %281 = vector.broadcast %280 : vector<16x1xf32> to vector<16x128xf32>
    %282 = arith.mulf %272, %281 : vector<16x128xf32>
    %c192 = arith.constant 192 : index
    %c0_102 = arith.constant 0 : index
    %283 = vector.load %arg3[%c192, %c0_102] : memref<224x128xf32, #tpu.memory_space<vmem>>, vector<1x128xf32>
    %284 = vector.broadcast %283 : vector<1x128xf32> to vector<16x128xf32>
    %285 = arith.mulf %282, %284 : vector<16x128xf32>
    %c200 = arith.constant 200 : index
    %c0_103 = arith.constant 0 : index
    %286 = vector.load %arg3[%c200, %c0_103] : memref<224x128xf32, #tpu.memory_space<vmem>>, vector<1x128xf32>
    %287 = vector.broadcast %286 : vector<1x128xf32> to vector<16x128xf32>
    %288 = arith.addf %285, %287 : vector<16x128xf32>
    %c0_104 = arith.constant 0 : index
    %c0_105 = arith.constant 0 : index
    %c0_106 = arith.constant 0 : index
    %289 = vector.load %arg4[%c0_104, %c0_105, %c0_106] : memref<1x16x128xf32, #tpu.memory_space<vmem>>, vector<1x16x128xf32>
    %290 = vector.shape_cast %289 : vector<1x16x128xf32> to vector<16x128xf32>
    %291 = vector.shape_cast %288 : vector<16x128xf32> to vector<1x16x128xf32>
    tpu.vector_store %arg4[%c0_104, %c0_105, %c0_106], %291 {strides = array<i32>} : memref<1x16x128xf32, #tpu.memory_space<vmem>>, vector<1x16x128xf32>,
    return
  }
  func.func @transform_0(%arg0: i32) -> (i32, i32, i32) {
    %c0_i32 = arith.constant 0 : i32
    %c0_i32_0 = arith.constant 0 : i32
    %c0_i32_1 = arith.constant 0 : i32
    return %arg0, %c0_i32, %c0_i32_0 : i32, i32, i32
  }
  func.func @transform_1(%arg0: i32) -> (i32, i32) {
    %c0_i32 = arith.constant 0 : i32
    %c0_i32_0 = arith.constant 0 : i32
    %c0_i32_1 = arith.constant 0 : i32
    return %c0_i32, %c0_i32_0 : i32, i32
  }
  func.func @transform_2(%arg0: i32) -> (i32, i32) {
    %c0_i32 = arith.constant 0 : i32
    %c0_i32_0 = arith.constant 0 : i32
    %c0_i32_1 = arith.constant 0 : i32
    return %c0_i32, %c0_i32_0 : i32, i32
  }
  func.func @transform_3(%arg0: i32) -> (i32, i32, i32) {
    %c0_i32 = arith.constant 0 : i32
    %c0_i32_0 = arith.constant 0 : i32
    %c0_i32_1 = arith.constant 0 : i32
    return %arg0, %c0_i32, %c0_i32_0 : i32, i32, i32
  }
}

</mosaic_0001>

<llo_original>
// kernel: tpu_custom_call.1
$region0: #{tpu_custom_call.1}
  #allocation0 [shape = 'u32[]', space=smem, size = 0x4, offset = 0x4, fixed_abs, tag = 'smem constant byte address 0x4 - core index']
  #allocation1 [shape = 'u32[144,128]{1,0:T(1,128)}', space=vmem, size = 0x12000, scoped, tag = 'internal scratch']
  %s0 = inlined_call_operand.hbm [shape: f32[2,8,128], index: 0, kind: input, shape index: {}]
  %s1 = inlined_call_operand.hbm [shape: bf16[2048,128], index: 1, kind: input, shape index: {}]
  %s2 = inlined_call_operand.hbm [shape: f32[224,128], index: 2, kind: input, shape index: {}]
  %s3 = inlined_call_operand.hbm [shape: f32[2,16,128], index: 3, kind: output, shape index: {}]
  %s4 = sld [smem:[#allocation0]]
  $region57: #{tpu_custom_call.1} parent=0
    _
  %s6 = ssub.s32 1, %s4
  %s7 = scalar_select 0, %s6, %s4
  $region1: #{tpu_custom_call.1} parent=0
    #allocation2 [shape = 'u8[8192]{0}', space=vmem, size = 0x2000, scoped, tag = 'input window, operand 0']
    #allocation3 [shape = 's32[2]{0}', space=sflag, size = 0x8, scoped, tag = 'scoped memory for tpu_custom_call.1']
    #allocation4 [shape = 's32[2]{0}', space=sflag, size = 0x8, scoped, tag = 'scoped memory for tpu_custom_call.1']
    #allocation5 [shape = 'u8[524288]{0}', space=vmem, size = 0x80000, scoped, tag = 'input window, operand 1, single buffered']
    #allocation6 [shape = 's32[1]{0}', space=sflag, size = 0x4, scoped, tag = 'scoped memory for tpu_custom_call.1']
    #allocation7 [shape = 'u8[114688]{0}', space=vmem, size = 0x1c000, scoped, tag = 'input window, operand 2, single buffered']
    #allocation8 [shape = 'u8[16384]{0}', space=vmem, size = 0x4000, scoped, tag = 'output window, operand 0']
    %8 = vsyncpa [#allocation3], 0
    %s9 = scalar_lea.sflag [#allocation3], 1
    %10 = vsyncpa %s9, 0
    %11 = vsyncpa [#allocation6], 0
    %12 = vsyncpa [#allocation4], 0
    %s13 = scalar_lea.sflag [#allocation4], 1
    %14 = vsyncpa %s13, 0
    loop: start=0, step=1, limit=4
    $region2: #{tpu_custom_call.1} parent=1 // loop_pre_header
      _
    $region3: #{tpu_custom_call.1} parent=1 // loop_header
      %s16 = sphi 0, %s20
      %p17 = scmp.ge.s32.totalorder %s16, 4
      %s26 = sphi 0, %s28
      %s29 = sphi 0, %s26
      %s30 = sphi 0, %s29
      %s46 = sphi 0, %s30
      %s50 = sphi 0, %s50
      %s52 = sphi 0, %s50
      %s53 = sphi 0, %s52
      %s67 = sphi 0, %s53
      %s71 = sphi 0, %s71
      %s73 = sphi 0, %s71
      %s74 = sphi 0, %s73
      %s88 = sphi 0, %s74
      %s94 = sphi 0, %s96
      %s97 = sphi 0, %s94
      %s98 = sphi 0, %s97
      %s114 = sphi 0, %s98
    $region4: #{tpu_custom_call.1} parent=1 // loop_header_branch
      %19 = sbr.rel (%p17) target = $region8
    $region5: #{tpu_custom_call.1} parent=1 // loop_body
      %s21 = ssub.s32 %s16, 1
      %s22 = ssub.s32 %s16, 2
      %s23 = sadd.s32 %s16, 1
      %s24 = ssub.s32 %s16, %s23
      %p25 = scmp.eq.s32.totalorder %s24, 0
      %s27 = sadd.s32 %s26, 1
      %s28 = scalar_select %p25, %s26, %s27
      %p31 = pneg %p25
      %p32 = scmp.eq.s32.totalorder %s16, 1
      %p33 = por %p31, %p32
      %p34 = scmp.ne.s32.totalorder %s26, %s29
      %p35 = scmp.eq.s32.totalorder %s16, 0
      %p36 = por %p34, %p35
      %p37 = scmp.ne.s32.totalorder %s26, %s29
      %p38 = scmp.eq.s32.totalorder %s21, 1
      %p39 = por %p37, %p38
      %p40 = scmp.ne.s32.totalorder %s29, %s30
      %p41 = scmp.eq.s32.totalorder %s21, 0
      %p42 = por %p40, %p41
      %p43 = scmp.ne.s32.totalorder %s29, %s30
      %p44 = scmp.eq.s32.totalorder %s22, 1
      %p45 = por %p43, %p44
      %p47 = scmp.ne.s32.totalorder %s30, %s46
      %p48 = scmp.eq.s32.totalorder %s22, 0
      %p49 = por %p47, %p48
      %s51 = sadd.s32 %s50, 1
      %p54 = scmp.eq.s32.totalorder %s16, 1
      %p55 = scmp.ne.s32.totalorder %s50, %s52
      %p56 = scmp.eq.s32.totalorder %s16, 0
      %p57 = por %p55, %p56
      %p58 = scmp.ne.s32.totalorder %s50, %s52
      %p59 = scmp.eq.s32.totalorder %s21, 1
      %p60 = por %p58, %p59
      %p61 = scmp.ne.s32.totalorder %s52, %s53
      %p62 = scmp.eq.s32.totalorder %s21, 0
      %p63 = por %p61, %p62
      %p64 = scmp.ne.s32.totalorder %s52, %s53
      %p65 = scmp.eq.s32.totalorder %s22, 1
      %p66 = por %p64, %p65
      %p68 = scmp.ne.s32.totalorder %s53, %s67
      %p69 = scmp.eq.s32.totalorder %s22, 0
      %p70 = por %p68, %p69
      %s72 = sadd.s32 %s71, 1
      %p75 = scmp.eq.s32.totalorder %s16, 1
      %p76 = scmp.ne.s32.totalorder %s71, %s73
      %p77 = scmp.eq.s32.totalorder %s16, 0
      %p78 = por %p76, %p77
      %p79 = scmp.ne.s32.totalorder %s71, %s73
      %p80 = scmp.eq.s32.totalorder %s21, 1
      %p81 = por %p79, %p80
      %p82 = scmp.ne.s32.totalorder %s73, %s74
      %p83 = scmp.eq.s32.totalorder %s21, 0
      %p84 = por %p82, %p83
      %p85 = scmp.ne.s32.totalorder %s73, %s74
      %p86 = scmp.eq.s32.totalorder %s22, 1
      %p87 = por %p85, %p86
      %p89 = scmp.ne.s32.totalorder %s74, %s88
      %p90 = scmp.eq.s32.totalorder %s22, 0
      %p91 = por %p89, %p90
      %s92 = ssub.s32 %s16, %s23
      %p93 = scmp.eq.s32.totalorder %s92, 0
      %s95 = sadd.s32 %s94, 1
      %s96 = scalar_select %p93, %s94, %s95
      %p99 = pneg %p93
      %p100 = scmp.eq.s32.totalorder %s16, 1
      %p101 = por %p99, %p100
      %p102 = scmp.ne.s32.totalorder %s94, %s97
      %p103 = scmp.eq.s32.totalorder %s16, 0
      %p104 = por %p102, %p103
      %p105 = scmp.ne.s32.totalorder %s94, %s97
      %p106 = scmp.eq.s32.totalorder %s21, 1
      %p107 = por %p105, %p106
      %p108 = scmp.ne.s32.totalorder %s97, %s98
      %p109 = scmp.eq.s32.totalorder %s21, 0
      %p110 = por %p108, %p109
      %p111 = scmp.ne.s32.totalorder %s97, %s98
      %p112 = scmp.eq.s32.totalorder %s22, 1
      %p113 = por %p111, %p112
      %p115 = scmp.ne.s32.totalorder %s98, %s114
      %p116 = scmp.eq.s32.totalorder %s22, 0
      %p117 = por %p115, %p116
      %p118 = scmp.le.s32.totalorder 1, %s16
      %p119 = scmp.lt.s32.totalorder %s16, 3
      %p120 = pnand %p118, %p119
      %p121 = pneg %p120
      // Predicated region
      $region9: #{tpu_custom_call.1} parent=5 // pred_check
        _
      $region10: #{tpu_custom_call.1} parent=5 // pred_check_branch
        %123 = sbr.rel (%p120) target = $region12
      $region11: #{tpu_custom_call.1} parent=5 // pred_region
        %s124 = ssub.s32 %s16, 1
        // Predicated region
        $region13: #{tpu_custom_call.1} parent=11 // pred_check
          %p125 = pneg %p63
        $region14: #{tpu_custom_call.1} parent=11 // pred_check_branch
          %127 = sbr.rel (%p125) target = $region16
        $region15: #{tpu_custom_call.1} parent=11 // pred_region
          %s129 = ssub.s32 16384, 16384
          %130 = vsyncadd [#allocation6], %s129
          %s131 = sshll.u32 [#allocation5], 4
          %s132 = int_to_ptr.vmem [resolvable:$true] %s131
          %137 = dma.hbm_to_vmem [thread:$0]  %s1, 16384, %s132, [#allocation6], 64, 64, 4
        $region16: #{tpu_custom_call.1} parent=11 // pred_fallthru
          _
        // Predicated region
        $region17: #{tpu_custom_call.1} parent=11 // pred_check
          %p138 = pneg %p84
        $region18: #{tpu_custom_call.1} parent=11 // pred_check_branch
          %140 = sbr.rel (%p138) target = $region20
        $region19: #{tpu_custom_call.1} parent=11 // pred_region
          %s142 = ssub.s32 3584, 3584
          %143 = vsyncadd [#allocation6], %s142
          %s144 = sshll.u32 [#allocation7], 4
          %s145 = int_to_ptr.vmem [resolvable:$true] %s144
          %150 = dma.hbm_to_vmem [thread:$0]  %s2, 3584, %s145, [#allocation6], 128, 128, 8
        $region20: #{tpu_custom_call.1} parent=11 // pred_fallthru
          _
      $region12: #{tpu_custom_call.1} parent=5 // pred_fallthru
        _
      %p151 = scmp.lt.s32.totalorder %s16, 2
      // Predicated region
      $region21: #{tpu_custom_call.1} parent=5 // pred_check
        %p152 = pneg %p151
      $region22: #{tpu_custom_call.1} parent=5 // pred_check_branch
        %154 = sbr.rel (%p152) target = $region24
      $region23: #{tpu_custom_call.1} parent=5 // pred_region
        // Predicated region
        $region25: #{tpu_custom_call.1} parent=23 // pred_check
          %p155 = pneg %p36
        $region26: #{tpu_custom_call.1} parent=23 // pred_check_branch
          %157 = sbr.rel (%p155) target = $region28
        $region27: #{tpu_custom_call.1} parent=23 // pred_region
          %s158 = sand.u32 %s26, 1
          %s159 = scalar_lea.sflag [#allocation3], %s158
          %s160 = sand.u32 %s26, 1
          %s161 = smul.addr %s160, 8
          %s162 = scalar_lea.vmem [#allocation2], %s161
          %s164 = ssub.s32 128, 128
          %165 = vsyncadd %s159, %s164
          %s166 = smul.addr %s16, 128
          %s167 = scalar_lea.hbm %s0, %s166
          %s169 = sshll.u32 %s162, 4
          %s170 = int_to_ptr.vmem [resolvable:$true] %s169
          %172 = dma.hbm_to_vmem [thread:$0]  %s167, 128, %s170, %s159
        $region28: #{tpu_custom_call.1} parent=23 // pred_fallthru
          _
      $region24: #{tpu_custom_call.1} parent=5 // pred_fallthru
        _
      %p173 = scmp.le.s32.totalorder 1, %s16
      %p174 = scmp.lt.s32.totalorder %s16, 3
      %p175 = pnand %p173, %p174
      %p176 = pneg %p175
      // Predicated region
      $region29: #{tpu_custom_call.1} parent=5 // pred_check
        _
      $region30: #{tpu_custom_call.1} parent=5 // pred_check_branch
        %178 = sbr.rel (%p175) target = $region32
      $region31: #{tpu_custom_call.1} parent=5 // pred_region
        %s179 = ssub.s32 %s16, 1
        %s180 = sand.u32 %s29, 1
        %s181 = scalar_lea.sflag [#allocation3], %s180
        %s182 = sand.u32 %s29, 1
        %s183 = smul.addr %s182, 8
        %s184 = scalar_lea.vmem [#allocation2], %s183
        // Predicated region
        $region33: #{tpu_custom_call.1} parent=31 // pred_check
          %p185 = pneg %p42
        $region34: #{tpu_custom_call.1} parent=31 // pred_check_branch
          %187 = sbr.rel (%p185) target = $region36
        $region35: #{tpu_custom_call.1} parent=31 // pred_region
          %188 = dma.done %s181, 128
        $region36: #{tpu_custom_call.1} parent=31 // pred_fallthru
          _
        // Predicated region
        $region37: #{tpu_custom_call.1} parent=31 // pred_check
          %p189 = pneg %p63
        $region38: #{tpu_custom_call.1} parent=31 // pred_check_branch
          %191 = sbr.rel (%p189) target = $region40
        $region39: #{tpu_custom_call.1} parent=31 // pred_region
          %192 = dma.done [#allocation6], 16384
        $region40: #{tpu_custom_call.1} parent=31 // pred_fallthru
          _
        // Predicated region
        $region41: #{tpu_custom_call.1} parent=31 // pred_check
          %p193 = pneg %p84
        $region42: #{tpu_custom_call.1} parent=31 // pred_check_branch
          %195 = sbr.rel (%p193) target = $region44
        $region43: #{tpu_custom_call.1} parent=31 // pred_region
          %196 = dma.done [#allocation6], 3584
        $region44: #{tpu_custom_call.1} parent=31 // pred_fallthru
          _
        %s197 = sand.u32 %s29, 1
        %s198 = scalar_lea.sflag [#allocation3], %s197
        %s199 = sand.u32 %s29, 1
        %s200 = smul.addr %s199, 8
        %s201 = scalar_lea.vmem [#allocation2], %s200
        %p202 = pneg %p42
        %p203 = pneg %p39
        %p204 = pneg %p63
        %p205 = pneg %p60
        %p206 = pneg %p84
        %p207 = pneg %p81
        %p208 = pneg %p110
        %p209 = pneg %p107
        %s210 = sand.u32 %s97, 1
        %s211 = scalar_lea.sflag [#allocation4], %s210
        %s212 = sand.u32 %s97, 1
        %s213 = smul.addr %s212, 16
        %s214 = scalar_lea.vmem [#allocation8], %s213
        %v216 = vlaneseq
        %v217 = vand.u32 %v216, 127
        %vm218 = vcmp.lt.s32.totalorder %v217, 32
        %v219 = vsel %vm218, 1, 0
        %v220 = vcvt.s32.f32 %v219
        %v221 = vld [vmem:[%s184] sm:$0xff]
        %v222 = vpack.c.bf16 %v221, %v221
        %v223 = vld [vmem:[#allocation5] sm:$0xf]
        %v224 = vld [vmem:[#allocation5 + $0x4] sm:$0xf]
        %v225 = vld [vmem:[#allocation5 + $0x8] sm:$0xf]
        %v226 = vld [vmem:[#allocation5 + $0xc] sm:$0xf]
        %v227 = vld [vmem:[#allocation5 + $0x10] sm:$0xf]
        %v228 = vld [vmem:[#allocation5 + $0x14] sm:$0xf]
        %v229 = vld [vmem:[#allocation5 + $0x18] sm:$0xf]
        %v230 = vld [vmem:[#allocation5 + $0x1c] sm:$0xf]
        %v231 = vld [vmem:[#allocation5 + $0x20] sm:$0xf]
        %v232 = vld [vmem:[#allocation5 + $0x24] sm:$0xf]
        %v233 = vld [vmem:[#allocation5 + $0x28] sm:$0xf]
        %v234 = vld [vmem:[#allocation5 + $0x2c] sm:$0xf]
        %v235 = vld [vmem:[#allocation5 + $0x30] sm:$0xf]
        %v236 = vld [vmem:[#allocation5 + $0x34] sm:$0xf]
        %v237 = vld [vmem:[#allocation5 + $0x38] sm:$0xf]
        %v238 = vld [vmem:[#allocation5 + $0x3c] sm:$0xf]
        %v239 = vld [vmem:[#allocation7] sm:$0x1]
        %v240 = vlaneseq
        %v241 = vshrl.u32 %v240, 7
        %v242 = vsub.s32 0, %v241
        %v243 = vrot.slane %v239, %v242
        %v260 = vunpack.c.l.b16 %v223
        %v261 = vunpack.c.l.b16 %v224
        %v262 = vunpack.c.l.b16 %v225
        %v263 = vunpack.c.l.b16 %v226
        %v264 = vunpack.c.l.b16 %v227
        %v265 = vunpack.c.l.b16 %v228
        %v266 = vunpack.c.l.b16 %v229
        %v267 = vunpack.c.l.b16 %v230
        %v268 = vunpack.c.l.b16 %v231
        %v269 = vunpack.c.l.b16 %v232
        %v270 = vunpack.c.l.b16 %v233
        %v271 = vunpack.c.l.b16 %v234
        %v272 = vunpack.c.l.b16 %v235
        %v273 = vunpack.c.l.b16 %v236
        %v274 = vunpack.c.l.b16 %v237
        %v275 = vunpack.c.l.b16 %v238
        %v276 = vpack.c.b16 %v261, %v260
        %v277 = vpack.c.b16 %v263, %v262
        %v278 = vpack.c.b16 %v265, %v264
        %v279 = vpack.c.b16 %v267, %v266
        %v280 = vpack.c.b16 %v269, %v268
        %v281 = vpack.c.b16 %v271, %v270
        %v282 = vpack.c.b16 %v273, %v272
        %v283 = vpack.c.b16 %v275, %v274
        %292 = vmatprep.subr.bf16.mxu0 0
        %293 = vmatpush1.bf16.msra.mxu0 %v276
        %294 = vmatprep.subr.bf16.mxu0 0
        %295 = vmatpush1.bf16.msra.mxu0 %v277
        %296 = vmatprep.subr.bf16.mxu0 0
        %297 = vmatpush1.bf16.msra.mxu0 %v278
        %298 = vmatprep.subr.bf16.mxu0 0
        %299 = vmatpush1.bf16.msra.mxu0 %v279
        %300 = vmatprep.subr.bf16.mxu0 0
        %301 = vmatpush1.bf16.msra.mxu0 %v280
        %302 = vmatprep.subr.bf16.mxu0 0
        %303 = vmatpush1.bf16.msra.mxu0 %v281
        %304 = vmatprep.subr.bf16.mxu0 0
        %305 = vmatpush1.bf16.msra.mxu0 %v282
        %306 = vmatprep.subr.bf16.mxu0 0
        %307 = vmatpush1.bf16.msra.mxu0 %v283
        %308 = vmatprep.subr.bf16.mxu0 0
        %309 = vmatpush1.bf16.msra.mxu0 0
        %310 = vmatprep.subr.bf16.mxu0 0
        %311 = vmatpush1.bf16.msra.mxu0 0
        %312 = vmatprep.subr.bf16.mxu0 0
        %313 = vmatpush1.bf16.msra.mxu0 0
        %314 = vmatprep.subr.bf16.mxu0 0
        %315 = vmatpush1.bf16.msra.mxu0 0
        %316 = vmatprep.subr.bf16.mxu0 0
        %317 = vmatpush1.bf16.msra.mxu0 0
        %318 = vmatprep.subr.bf16.mxu0 0
        %319 = vmatpush1.bf16.msra.mxu0 0
        %320 = vmatprep.subr.bf16.mxu0 0
        %321 = vmatpush1.bf16.msra.mxu0 0
        %322 = vmatprep.subr.bf16.mxu0 0
        %323 = vmatpush1.bf16.msra.mxu0 0
        %324 = vmatprep.mubr.bf16.mxu0 0
        %325 = vmatmul.mubr.bf16.gmra.mrb[0].mxu0 %v222
        %v326 = vpop.f32.mrb[0].mxu0
        %v327 = vadd.f32 %v243, %v326
        %v328 = vpop.f32.mrb[0].mxu0
        %v329 = vpop.f32.mrb[0].mxu0
        %v330 = vpop.f32.mrb[0].mxu0
        %331 = vdwg.mxu0
        %v332 = vld [vmem:[#allocation5 + $0x40] sm:$0xf]
        %v333 = vld [vmem:[#allocation5 + $0x44] sm:$0xf]
        %v334 = vld [vmem:[#allocation5 + $0x48] sm:$0xf]
        %v335 = vld [vmem:[#allocation5 + $0x4c] sm:$0xf]
        %v336 = vld [vmem:[#allocation5 + $0x50] sm:$0xf]
        %v337 = vld [vmem:[#allocation5 + $0x54] sm:$0xf]
        %v338 = vld [vmem:[#allocation5 + $0x58] sm:$0xf]
        %v339 = vld [vmem:[#allocation5 + $0x5c] sm:$0xf]
        %v340 = vld [vmem:[#allocation5 + $0x60] sm:$0xf]
        %v341 = vld [vmem:[#allocation5 + $0x64] sm:$0xf]
        %v342 = vld [vmem:[#allocation5 + $0x68] sm:$0xf]
        %v343 = vld [vmem:[#allocation5 + $0x6c] sm:$0xf]
        %v344 = vld [vmem:[#allocation5 + $0x70] sm:$0xf]
        %v345 = vld [vmem:[#allocation5 + $0x74] sm:$0xf]
        %v346 = vld [vmem:[#allocation5 + $0x78] sm:$0xf]
        %v347 = vld [vmem:[#allocation5 + $0x7c] sm:$0xf]
        %v348 = vld [vmem:[#allocation7 + $0x8] sm:$0x1]
        %v349 = vlaneseq
        %v350 = vshrl.u32 %v349, 7
        %v351 = vsub.s32 0, %v350
        %v352 = vrot.slane %v348, %v351
        %v369 = vunpack.c.l.b16 %v332
        %v370 = vunpack.c.l.b16 %v333
        %v371 = vunpack.c.l.b16 %v334
        %v372 = vunpack.c.l.b16 %v335
        %v373 = vunpack.c.l.b16 %v336
        %v374 = vunpack.c.l.b16 %v337
        %v375 = vunpack.c.l.b16 %v338
        %v376 = vunpack.c.l.b16 %v339
        %v377 = vunpack.c.l.b16 %v340
        %v378 = vunpack.c.l.b16 %v341
        %v379 = vunpack.c.l.b16 %v342
        %v380 = vunpack.c.l.b16 %v343
        %v381 = vunpack.c.l.b16 %v344
        %v382 = vunpack.c.l.b16 %v345
        %v383 = vunpack.c.l.b16 %v346
        %v384 = vunpack.c.l.b16 %v347
        %v385 = vpack.c.b16 %v370, %v369
        %v386 = vpack.c.b16 %v372, %v371
        %v387 = vpack.c.b16 %v374, %v373
        %v388 = vpack.c.b16 %v376, %v375
        %v389 = vpack.c.b16 %v378, %v377
        %v390 = vpack.c.b16 %v380, %v379
        %v391 = vpack.c.b16 %v382, %v381
        %v392 = vpack.c.b16 %v384, %v383
        %401 = vmatprep.subr.bf16.mxu0 0
        %402 = vmatpush1.bf16.msra.mxu0 %v385
        %403 = vmatprep.subr.bf16.mxu0 0
        %404 = vmatpush1.bf16.msra.mxu0 %v386
        %405 = vmatprep.subr.bf16.mxu0 0
        %406 = vmatpush1.bf16.msra.mxu0 %v387
        %407 = vmatprep.subr.bf16.mxu0 0
        %408 = vmatpush1.bf16.msra.mxu0 %v388
        %409 = vmatprep.subr.bf16.mxu0 0
        %410 = vmatpush1.bf16.msra.mxu0 %v389
        %411 = vmatprep.subr.bf16.mxu0 0
        %412 = vmatpush1.bf16.msra.mxu0 %v390
        %413 = vmatprep.subr.bf16.mxu0 0
        %414 = vmatpush1.bf16.msra.mxu0 %v391
        %415 = vmatprep.subr.bf16.mxu0 0
        %416 = vmatpush1.bf16.msra.mxu0 %v392
        %417 = vmatprep.subr.bf16.mxu0 0
        %418 = vmatpush1.bf16.msra.mxu0 0
        %419 = vmatprep.subr.bf16.mxu0 0
        %420 = vmatpush1.bf16.msra.mxu0 0
        %421 = vmatprep.subr.bf16.mxu0 0
        %422 = vmatpush1.bf16.msra.mxu0 0
        %423 = vmatprep.subr.bf16.mxu0 0
        %424 = vmatpush1.bf16.msra.mxu0 0
        %425 = vmatprep.subr.bf16.mxu0 0
        %426 = vmatpush1.bf16.msra.mxu0 0
        %427 = vmatprep.subr.bf16.mxu0 0
        %428 = vmatpush1.bf16.msra.mxu0 0
        %429 = vmatprep.subr.bf16.mxu0 0
        %430 = vmatpush1.bf16.msra.mxu0 0
        %431 = vmatprep.subr.bf16.mxu0 0
        %432 = vmatpush1.bf16.msra.mxu0 0
        %433 = vmatprep.mubr.bf16.mxu0 0
        %434 = vmatmul.mubr.bf16.gmra.mrb[0].mxu0 %v222
        %v435 = vpop.f32.mrb[0].mxu0
        %v436 = vadd.f32 %v352, %v435
        %v437 = vpop.f32.mrb[0].mxu0
        %v438 = vpop.f32.mrb[0].mxu0
        %v439 = vpop.f32.mrb[0].mxu0
        %440 = vdwg.mxu0
        %v441 = vld [vmem:[#allocation5 + $0x80] sm:$0xf]
        %v442 = vld [vmem:[#allocation5 + $0x84] sm:$0xf]
        %v443 = vld [vmem:[#allocation5 + $0x88] sm:$0xf]
        %v444 = vld [vmem:[#allocation5 + $0x8c] sm:$0xf]
        %v445 = vld [vmem:[#allocation5 + $0x90] sm:$0xf]
        %v446 = vld [vmem:[#allocation5 + $0x94] sm:$0xf]
        %v447 = vld [vmem:[#allocation5 + $0x98] sm:$0xf]
        %v448 = vld [vmem:[#allocation5 + $0x9c] sm:$0xf]
        %v449 = vld [vmem:[#allocation5 + $0xa0] sm:$0xf]
        %v450 = vld [vmem:[#allocation5 + $0xa4] sm:$0xf]
        %v451 = vld [vmem:[#allocation5 + $0xa8] sm:$0xf]
        %v452 = vld [vmem:[#allocation5 + $0xac] sm:$0xf]
        %v453 = vld [vmem:[#allocation5 + $0xb0] sm:$0xf]
        %v454 = vld [vmem:[#allocation5 + $0xb4] sm:$0xf]
        %v455 = vld [vmem:[#allocation5 + $0xb8] sm:$0xf]
        %v456 = vld [vmem:[#allocation5 + $0xbc] sm:$0xf]
        %v457 = vld [vmem:[#allocation7 + $0x10] sm:$0x1]
        %v458 = vlaneseq
        %v459 = vshrl.u32 %v458, 7
        %v460 = vsub.s32 0, %v459
        %v461 = vrot.slane %v457, %v460
        %v478 = vunpack.c.l.b16 %v441
        %v479 = vunpack.c.l.b16 %v442
        %v480 = vunpack.c.l.b16 %v443
        %v481 = vunpack.c.l.b16 %v444
        %v482 = vunpack.c.l.b16 %v445
        %v483 = vunpack.c.l.b16 %v446
        %v484 = vunpack.c.l.b16 %v447
        %v485 = vunpack.c.l.b16 %v448
        %v486 = vunpack.c.l.b16 %v449
        %v487 = vunpack.c.l.b16 %v450
        %v488 = vunpack.c.l.b16 %v451
        %v489 = vunpack.c.l.b16 %v452
        %v490 = vunpack.c.l.b16 %v453
        %v491 = vunpack.c.l.b16 %v454
        %v492 = vunpack.c.l.b16 %v455
        %v493 = vunpack.c.l.b16 %v456
        %v494 = vpack.c.b16 %v479, %v478
        %v495 = vpack.c.b16 %v481, %v480
        %v496 = vpack.c.b16 %v483, %v482
        %v497 = vpack.c.b16 %v485, %v484
        %v498 = vpack.c.b16 %v487, %v486
        %v499 = vpack.c.b16 %v489, %v488
        %v500 = vpack.c.b16 %v491, %v490
        %v501 = vpack.c.b16 %v493, %v492
        %510 = vmatprep.subr.bf16.mxu0 0
        %511 = vmatpush1.bf16.msra.mxu0 %v494
        %512 = vmatprep.subr.bf16.mxu0 0
        %513 = vmatpush1.bf16.msra.mxu0 %v495
        %514 = vmatprep.subr.bf16.mxu0 0
        %515 = vmatpush1.bf16.msra.mxu0 %v496
        %516 = vmatprep.subr.bf16.mxu0 0
        %517 = vmatpush1.bf16.msra.mxu0 %v497
        %518 = vmatprep.subr.bf16.mxu0 0
        %519 = vmatpush1.bf16.msra.mxu0 %v498
        %520 = vmatprep.subr.bf16.mxu0 0
        %521 = vmatpush1.bf16.msra.mxu0 %v499
        %522 = vmatprep.subr.bf16.mxu0 0
        %523 = vmatpush1.bf16.msra.mxu0 %v500
        %524 = vmatprep.subr.bf16.mxu0 0
        %525 = vmatpush1.bf16.msra.mxu0 %v501
        %526 = vmatprep.subr.bf16.mxu0 0
        %527 = vmatpush1.bf16.msra.mxu0 0
        %528 = vmatprep.subr.bf16.mxu0 0
        %529 = vmatpush1.bf16.msra.mxu0 0
        %530 = vmatprep.subr.bf16.mxu0 0
        %531 = vmatpush1.bf16.msra.mxu0 0
        %532 = vmatprep.subr.bf16.mxu0 0
        %533 = vmatpush1.bf16.msra.mxu0 0
        %534 = vmatprep.subr.bf16.mxu0 0
        %535 = vmatpush1.bf16.msra.mxu0 0
        %536 = vmatprep.subr.bf16.mxu0 0
        %537 = vmatpush1.bf16.msra.mxu0 0
        %538 = vmatprep.subr.bf16.mxu0 0
        %539 = vmatpush1.bf16.msra.mxu0 0
        %540 = vmatprep.subr.bf16.mxu0 0
        %541 = vmatpush1.bf16.msra.mxu0 0
        %542 = vmatprep.mubr.bf16.mxu0 0
        %543 = vmatmul.mubr.bf16.gmra.mrb[0].mxu0 %v222
        %v544 = vpop.f32.mrb[0].mxu0
        %v545 = vadd.f32 %v461, %v544
        %v546 = vpop.f32.mrb[0].mxu0
        %v547 = vpop.f32.mrb[0].mxu0
        %v548 = vpop.f32.mrb[0].mxu0
        %549 = vdwg.mxu0
        %v550 = vpack.c.bf16 %v327, %v327
        %v551 = vpack.c.bf16 %v436, %v436
        %552 = vmatprep.subr.bf16.mxu0 0
        %553 = vmatpush1.bf16.xpose.msra.mxu0 %v551
        %554 = vmatprep.subr.bf16.mxu0 0
        %555 = vmatpush1.bf16.xpose.msra.mxu0 0
        %556 = vmatprep.subr.bf16.mxu0 0
        %557 = vmatpush1.bf16.xpose.msra.mxu0 0
        %558 = vmatprep.subr.bf16.mxu0 0
        %559 = vmatpush1.bf16.xpose.msra.mxu0 0
        %560 = vmatprep.subr.bf16.mxu0 0
        %561 = vmatpush1.bf16.xpose.msra.mxu0 0
        %562 = vmatprep.subr.bf16.mxu0 0
        %563 = vmatpush1.bf16.xpose.msra.mxu0 0
        %564 = vmatprep.subr.bf16.mxu0 0
        %565 = vmatpush1.bf16.xpose.msra.mxu0 0
        %566 = vmatprep.subr.bf16.mxu0 0
        %567 = vmatpush1.bf16.xpose.msra.mxu0 0
        %568 = vmatprep.subr.bf16.mxu0 0
        %569 = vmatpush1.bf16.xpose.msra.mxu0 0
        %570 = vmatprep.subr.bf16.mxu0 0
        %571 = vmatpush1.bf16.xpose.msra.mxu0 0
        %572 = vmatprep.subr.bf16.mxu0 0
        %573 = vmatpush1.bf16.xpose.msra.mxu0 0
        %574 = vmatprep.subr.bf16.mxu0 0
        %575 = vmatpush1.bf16.xpose.msra.mxu0 0
        %576 = vmatprep.subr.bf16.mxu0 0
        %577 = vmatpush1.bf16.xpose.msra.mxu0 0
        %578 = vmatprep.subr.bf16.mxu0 0
        %579 = vmatpush1.bf16.xpose.msra.mxu0 0
        %580 = vmatprep.subr.bf16.mxu0 0
        %581 = vmatpush1.bf16.xpose.msra.mxu0 0
        %582 = vmatprep.subr.bf16.mxu0 0
        %583 = vmatpush1.bf16.xpose.msra.mxu0 0
        %584 = vmatprep.mubr.bf16.mxu0 0
        %585 = vmatmul.mubr.bf16.gmra.mrb[0].mxu0 %v550
        %v586 = vpop.f32.mrb[0].mxu0
        %v587 = vadd.f32 0.0, %v586
        %v588 = vpop.f32.mrb[0].mxu0
        %v589 = vpop.f32.mrb[0].mxu0
        %v590 = vpop.f32.mrb[0].mxu0
        %591 = vdwg.mxu0
        %vm592 = vcmask 64512
        %v593 = vsel %vm592, %v587, -inf
        %594 = vmax.xlane.f32.xlu0 %v593
        %v595 = vpop.xlane.xlu0 %594
        %v596 = vsub.f32 %v587, %v595
        %v597 = vmul.f32 %v596, 1.442695
        %v598 = vpow.pop %v597
        %v599 = vsel %vm592, %v598, 0.0
        %600 = vadd.xlane.f32.xlu0 %v599
        %v601 = vpop.xlane.xlu0 %600
        %v602 = vrcp.pop %v601
        %v603 = vmul.f32 %v598, %v602
        %v604 = vpack.c.bf16 %v603, %v603
        %v605 = vpack.c.bf16 %v545, %v545
        %v607 = vsel %vm592, %v604, 0
        %vm609 = vcmask 1043456
        %v611 = vsel %vm609, %v605, 0
        %613 = vmatprep.subr.bf16.mxu0 0
        %614 = vmatpush1.bf16.msra.mxu0 %v611
        %615 = vmatprep.subr.bf16.mxu0 0
        %616 = vmatpush1.bf16.msra.mxu0 0
        %617 = vmatprep.subr.bf16.mxu0 0
        %618 = vmatpush1.bf16.msra.mxu0 0
        %619 = vmatprep.subr.bf16.mxu0 0
        %620 = vmatpush1.bf16.msra.mxu0 0
        %621 = vmatprep.subr.bf16.mxu0 0
        %622 = vmatpush1.bf16.msra.mxu0 0
        %623 = vmatprep.subr.bf16.mxu0 0
        %624 = vmatpush1.bf16.msra.mxu0 0
        %625 = vmatprep.subr.bf16.mxu0 0
        %626 = vmatpush1.bf16.msra.mxu0 0
        %627 = vmatprep.subr.bf16.mxu0 0
        %628 = vmatpush1.bf16.msra.mxu0 0
        %629 = vmatprep.subr.bf16.mxu0 0
        %630 = vmatpush1.bf16.msra.mxu0 0
        %631 = vmatprep.subr.bf16.mxu0 0
        %632 = vmatpush1.bf16.msra.mxu0 0
        %633 = vmatprep.subr.bf16.mxu0 0
        %634 = vmatpush1.bf16.msra.mxu0 0
        %635 = vmatprep.subr.bf16.mxu0 0
        %636 = vmatpush1.bf16.msra.mxu0 0
        %637 = vmatprep.subr.bf16.mxu0 0
        %638 = vmatpush1.bf16.msra.mxu0 0
        %639 = vmatprep.subr.bf16.mxu0 0
        %640 = vmatpush1.bf16.msra.mxu0 0
        %641 = vmatprep.subr.bf16.mxu0 0
        %642 = vmatpush1.bf16.msra.mxu0 0
        %643 = vmatprep.subr.bf16.mxu0 0
        %644 = vmatpush1.bf16.msra.mxu0 0
        %645 = vmatprep.mubr.bf16.mxu0 0
        %646 = vmatmul.mubr.bf16.gmra.mrb[0].mxu0 %v607
        %v647 = vpop.f32.mrb[0].mxu0
        %v648 = vadd.f32 0.0, %v647
        %v649 = vpop.f32.mrb[0].mxu0
        %v650 = vpop.f32.mrb[0].mxu0
        %v651 = vpop.f32.mrb[0].mxu0
        %652 = vdwg.mxu0
        %v653 = vpack.c.bf16 %v648, %v648
        %v654 = vld [vmem:[#allocation5 + $0xc0] sm:$0xf]
        %v655 = vld [vmem:[#allocation5 + $0xc4] sm:$0xf]
        %v656 = vld [vmem:[#allocation5 + $0xc8] sm:$0xf]
        %v657 = vld [vmem:[#allocation5 + $0xcc] sm:$0xf]
        %v658 = vld [vmem:[#allocation5 + $0xd0] sm:$0xf]
        %v659 = vld [vmem:[#allocation5 + $0xd4] sm:$0xf]
        %v660 = vld [vmem:[#allocation5 + $0xd8] sm:$0xf]
        %v661 = vld [vmem:[#allocation5 + $0xdc] sm:$0xf]
        %v662 = vld [vmem:[#allocation5 + $0xe0] sm:$0xf]
        %v663 = vld [vmem:[#allocation5 + $0xe4] sm:$0xf]
        %v664 = vld [vmem:[#allocation5 + $0xe8] sm:$0xf]
        %v665 = vld [vmem:[#allocation5 + $0xec] sm:$0xf]
        %v666 = vld [vmem:[#allocation5 + $0xf0] sm:$0xf]
        %v667 = vld [vmem:[#allocation5 + $0xf4] sm:$0xf]
        %v668 = vld [vmem:[#allocation5 + $0xf8] sm:$0xf]
        %v669 = vld [vmem:[#allocation5 + $0xfc] sm:$0xf]
        %v670 = vld [vmem:[#allocation7 + $0x18] sm:$0x1]
        %v671 = vlaneseq
        %v672 = vshrl.u32 %v671, 7
        %v673 = vsub.s32 0, %v672
        %v674 = vrot.slane %v670, %v673
        %v691 = vunpack.c.l.b16 %v654
        %v692 = vunpack.c.l.b16 %v655
        %v693 = vunpack.c.l.b16 %v656
        %v694 = vunpack.c.l.b16 %v657
        %v695 = vunpack.c.l.b16 %v658
        %v696 = vunpack.c.l.b16 %v659
        %v697 = vunpack.c.l.b16 %v660
        %v698 = vunpack.c.l.b16 %v661
        %v699 = vunpack.c.l.b16 %v662
        %v700 = vunpack.c.l.b16 %v663
        %v701 = vunpack.c.l.b16 %v664
        %v702 = vunpack.c.l.b16 %v665
        %v703 = vunpack.c.l.b16 %v666
        %v704 = vunpack.c.l.b16 %v667
        %v705 = vunpack.c.l.b16 %v668
        %v706 = vunpack.c.l.b16 %v669
        %v707 = vpack.c.b16 %v692, %v691
        %v708 = vpack.c.b16 %v694, %v693
        %v709 = vpack.c.b16 %v696, %v695
        %v710 = vpack.c.b16 %v698, %v697
        %v711 = vpack.c.b16 %v700, %v699
        %v712 = vpack.c.b16 %v702, %v701
        %v713 = vpack.c.b16 %v704, %v703
        %v714 = vpack.c.b16 %v706, %v705
        %723 = vmatprep.subr.bf16.mxu0 0
        %724 = vmatpush1.bf16.msra.mxu0 %v707
        %725 = vmatprep.subr.bf16.mxu0 0
        %726 = vmatpush1.bf16.msra.mxu0 %v708
        %727 = vmatprep.subr.bf16.mxu0 0
        %728 = vmatpush1.bf16.msra.mxu0 %v709
        %729 = vmatprep.subr.bf16.mxu0 0
        %730 = vmatpush1.bf16.msra.mxu0 %v710
        %731 = vmatprep.subr.bf16.mxu0 0
        %732 = vmatpush1.bf16.msra.mxu0 %v711
        %733 = vmatprep.subr.bf16.mxu0 0
        %734 = vmatpush1.bf16.msra.mxu0 %v712
        %735 = vmatprep.subr.bf16.mxu0 0
        %736 = vmatpush1.bf16.msra.mxu0 %v713
        %737 = vmatprep.subr.bf16.mxu0 0
        %738 = vmatpush1.bf16.msra.mxu0 %v714
        %739 = vmatprep.subr.bf16.mxu0 0
        %740 = vmatpush1.bf16.msra.mxu0 0
        %741 = vmatprep.subr.bf16.mxu0 0
        %742 = vmatpush1.bf16.msra.mxu0 0
        %743 = vmatprep.subr.bf16.mxu0 0
        %744 = vmatpush1.bf16.msra.mxu0 0
        %745 = vmatprep.subr.bf16.mxu0 0
        %746 = vmatpush1.bf16.msra.mxu0 0
        %747 = vmatprep.subr.bf16.mxu0 0
        %748 = vmatpush1.bf16.msra.mxu0 0
        %749 = vmatprep.subr.bf16.mxu0 0
        %750 = vmatpush1.bf16.msra.mxu0 0
        %751 = vmatprep.subr.bf16.mxu0 0
        %752 = vmatpush1.bf16.msra.mxu0 0
        %753 = vmatprep.subr.bf16.mxu0 0
        %754 = vmatpush1.bf16.msra.mxu0 0
        %755 = vmatprep.mubr.bf16.mxu0 0
        %756 = vmatmul.mubr.bf16.gmra.mrb[0].mxu0 %v653
        %v757 = vpop.f32.mrb[0].mxu0
        %v758 = vadd.f32 %v674, %v757
        %v759 = vpop.f32.mrb[0].mxu0
        %v760 = vpop.f32.mrb[0].mxu0
        %v761 = vpop.f32.mrb[0].mxu0
        %762 = vdwg.mxu0
        %v763 = vadd.f32 %v221, %v758
        %764 = vadd.xlane.f32.xlu0 %v763
        %v765 = vpop.xlane.xlu0 %764
        %v766 = vmul.f32 %v765, 0.03125
        %v767 = vsub.f32 %v763, %v766
        %v768 = vmul.f32 %v767, %v220
        %v769 = vmul.f32 %v768, %v768
        %770 = vadd.xlane.f32.xlu0 %v769
        %v771 = vpop.xlane.xlu0 %770
        %v772 = vmul.f32 %v771, 0.03125
        %v773 = vadd.f32 %v772, 1e-05
        %v774 = vrsqrt.pop %v773
        %v775 = vmul.f32 %v768, %v774
        %v776 = vld [vmem:[#allocation7 + $0x20] sm:$0x1]
        %v777 = vlaneseq
        %v778 = vshrl.u32 %v777, 7
        %v779 = vsub.s32 0, %v778
        %v780 = vrot.slane %v776, %v779
        %v781 = vmul.f32 %v775, %v780
        %v782 = vld [vmem:[#allocation7 + $0x28] sm:$0x1]
        %v783 = vlaneseq
        %v784 = vshrl.u32 %v783, 7
        %v785 = vsub.s32 0, %v784
        %v786 = vrot.slane %v782, %v785
        %v787 = vadd.f32 %v781, %v786
        %v788 = vpack.c.bf16 %v787, %v787
        %v789 = vld [vmem:[#allocation5 + $0x100] sm:$0xf]
        %v790 = vld [vmem:[#allocation5 + $0x104] sm:$0xf]
        %v791 = vld [vmem:[#allocation5 + $0x108] sm:$0xf]
        %v792 = vld [vmem:[#allocation5 + $0x10c] sm:$0xf]
        %v793 = vld [vmem:[#allocation5 + $0x110] sm:$0xf]
        %v794 = vld [vmem:[#allocation5 + $0x114] sm:$0xf]
        %v795 = vld [vmem:[#allocation5 + $0x118] sm:$0xf]
        %v796 = vld [vmem:[#allocation5 + $0x11c] sm:$0xf]
        %v797 = vld [vmem:[#allocation5 + $0x120] sm:$0xf]
        %v798 = vld [vmem:[#allocation5 + $0x124] sm:$0xf]
        %v799 = vld [vmem:[#allocation5 + $0x128] sm:$0xf]
        %v800 = vld [vmem:[#allocation5 + $0x12c] sm:$0xf]
        %v801 = vld [vmem:[#allocation5 + $0x130] sm:$0xf]
        %v802 = vld [vmem:[#allocation5 + $0x134] sm:$0xf]
        %v803 = vld [vmem:[#allocation5 + $0x138] sm:$0xf]
        %v804 = vld [vmem:[#allocation5 + $0x13c] sm:$0xf]
        %v805 = vld [vmem:[#allocation7 + $0x30] sm:$0x1]
        %v806 = vlaneseq
        %v807 = vshrl.u32 %v806, 7
        %v808 = vsub.s32 0, %v807
        %v809 = vrot.slane %v805, %v808
        %v826 = vunpack.c.l.b16 %v789
        %v827 = vunpack.c.l.b16 %v790
        %v828 = vunpack.c.l.b16 %v791
        %v829 = vunpack.c.l.b16 %v792
        %v830 = vunpack.c.l.b16 %v793
        %v831 = vunpack.c.l.b16 %v794
        %v832 = vunpack.c.l.b16 %v795
        %v833 = vunpack.c.l.b16 %v796
        %v834 = vunpack.c.l.b16 %v797
        %v835 = vunpack.c.l.b16 %v798
        %v836 = vunpack.c.l.b16 %v799
        %v837 = vunpack.c.l.b16 %v800
        %v838 = vunpack.c.l.b16 %v801
        %v839 = vunpack.c.l.b16 %v802
        %v840 = vunpack.c.l.b16 %v803
        %v841 = vunpack.c.l.b16 %v804
        %v842 = vpack.c.b16 %v827, %v826
        %v843 = vpack.c.b16 %v829, %v828
        %v844 = vpack.c.b16 %v831, %v830
        %v845 = vpack.c.b16 %v833, %v832
        %v846 = vpack.c.b16 %v835, %v834
        %v847 = vpack.c.b16 %v837, %v836
        %v848 = vpack.c.b16 %v839, %v838
        %v849 = vpack.c.b16 %v841, %v840
        %858 = vmatprep.subr.bf16.mxu0 0
        %859 = vmatpush1.bf16.msra.mxu0 %v842
        %860 = vmatprep.subr.bf16.mxu0 0
        %861 = vmatpush1.bf16.msra.mxu0 %v843
        %862 = vmatprep.subr.bf16.mxu0 0
        %863 = vmatpush1.bf16.msra.mxu0 %v844
        %864 = vmatprep.subr.bf16.mxu0 0
        %865 = vmatpush1.bf16.msra.mxu0 %v845
        %866 = vmatprep.subr.bf16.mxu0 0
        %867 = vmatpush1.bf16.msra.mxu0 %v846
        %868 = vmatprep.subr.bf16.mxu0 0
        %869 = vmatpush1.bf16.msra.mxu0 %v847
        %870 = vmatprep.subr.bf16.mxu0 0
        %871 = vmatpush1.bf16.msra.mxu0 %v848
        %872 = vmatprep.subr.bf16.mxu0 0
        %873 = vmatpush1.bf16.msra.mxu0 %v849
        %874 = vmatprep.subr.bf16.mxu0 0
        %875 = vmatpush1.bf16.msra.mxu0 0
        %876 = vmatprep.subr.bf16.mxu0 0
        %877 = vmatpush1.bf16.msra.mxu0 0
        %878 = vmatprep.subr.bf16.mxu0 0
        %879 = vmatpush1.bf16.msra.mxu0 0
        %880 = vmatprep.subr.bf16.mxu0 0
        %881 = vmatpush1.bf16.msra.mxu0 0
        %882 = vmatprep.subr.bf16.mxu0 0
        %883 = vmatpush1.bf16.msra.mxu0 0
        %884 = vmatprep.subr.bf16.mxu0 0
        %885 = vmatpush1.bf16.msra.mxu0 0
        %886 = vmatprep.subr.bf16.mxu0 0
        %887 = vmatpush1.bf16.msra.mxu0 0
        %888 = vmatprep.subr.bf16.mxu0 0
        %889 = vmatpush1.bf16.msra.mxu0 0
        %890 = vmatprep.mubr.bf16.mxu0 0
        %891 = vmatmul.mubr.bf16.gmra.mrb[0].mxu0 %v788
        %v892 = vpop.f32.mrb[0].mxu0
        %v893 = vadd.f32 %v809, %v892
        %v894 = vpop.f32.mrb[0].mxu0
        %v895 = vpop.f32.mrb[0].mxu0
        %v896 = vpop.f32.mrb[0].mxu0
        %897 = vdwg.mxu0
        %v898 = vmax.f32 %v893, 0.0
        %v899 = vpack.c.bf16 %v898, %v898
        %v900 = vld [vmem:[#allocation5 + $0x140] sm:$0xf]
        %v901 = vld [vmem:[#allocation5 + $0x144] sm:$0xf]
        %v902 = vld [vmem:[#allocation5 + $0x148] sm:$0xf]
        %v903 = vld [vmem:[#allocation5 + $0x14c] sm:$0xf]
        %v904 = vld [vmem:[#allocation5 + $0x150] sm:$0xf]
        %v905 = vld [vmem:[#allocation5 + $0x154] sm:$0xf]
        %v906 = vld [vmem:[#allocation5 + $0x158] sm:$0xf]
        %v907 = vld [vmem:[#allocation5 + $0x15c] sm:$0xf]
        %v908 = vld [vmem:[#allocation5 + $0x160] sm:$0xf]
        %v909 = vld [vmem:[#allocation5 + $0x164] sm:$0xf]
        %v910 = vld [vmem:[#allocation5 + $0x168] sm:$0xf]
        %v911 = vld [vmem:[#allocation5 + $0x16c] sm:$0xf]
        %v912 = vld [vmem:[#allocation5 + $0x170] sm:$0xf]
        %v913 = vld [vmem:[#allocation5 + $0x174] sm:$0xf]
        %v914 = vld [vmem:[#allocation5 + $0x178] sm:$0xf]
        %v915 = vld [vmem:[#allocation5 + $0x17c] sm:$0xf]
        %v916 = vld [vmem:[#allocation7 + $0x38] sm:$0x1]
        %v917 = vlaneseq
        %v918 = vshrl.u32 %v917, 7
        %v919 = vsub.s32 0, %v918
        %v920 = vrot.slane %v916, %v919
        %v937 = vunpack.c.l.b16 %v900
        %v938 = vunpack.c.l.b16 %v901
        %v939 = vunpack.c.l.b16 %v902
        %v940 = vunpack.c.l.b16 %v903
        %v941 = vunpack.c.l.b16 %v904
        %v942 = vunpack.c.l.b16 %v905
        %v943 = vunpack.c.l.b16 %v906
        %v944 = vunpack.c.l.b16 %v907
        %v945 = vunpack.c.l.b16 %v908
        %v946 = vunpack.c.l.b16 %v909
        %v947 = vunpack.c.l.b16 %v910
        %v948 = vunpack.c.l.b16 %v911
        %v949 = vunpack.c.l.b16 %v912
        %v950 = vunpack.c.l.b16 %v913
        %v951 = vunpack.c.l.b16 %v914
        %v952 = vunpack.c.l.b16 %v915
        %v953 = vpack.c.b16 %v938, %v937
        %v954 = vpack.c.b16 %v940, %v939
        %v955 = vpack.c.b16 %v942, %v941
        %v956 = vpack.c.b16 %v944, %v943
        %v957 = vpack.c.b16 %v946, %v945
        %v958 = vpack.c.b16 %v948, %v947
        %v959 = vpack.c.b16 %v950, %v949
        %v960 = vpack.c.b16 %v952, %v951
        %969 = vmatprep.subr.bf16.mxu0 0
        %970 = vmatpush1.bf16.msra.mxu0 %v953
        %971 = vmatprep.subr.bf16.mxu0 0
        %972 = vmatpush1.bf16.msra.mxu0 %v954
        %973 = vmatprep.subr.bf16.mxu0 0
        %974 = vmatpush1.bf16.msra.mxu0 %v955
        %975 = vmatprep.subr.bf16.mxu0 0
        %976 = vmatpush1.bf16.msra.mxu0 %v956
        %977 = vmatprep.subr.bf16.mxu0 0
        %978 = vmatpush1.bf16.msra.mxu0 %v957
        %979 = vmatprep.subr.bf16.mxu0 0
        %980 = vmatpush1.bf16.msra.mxu0 %v958
        %981 = vmatprep.subr.bf16.mxu0 0
        %982 = vmatpush1.bf16.msra.mxu0 %v959
        %983 = vmatprep.subr.bf16.mxu0 0
        %984 = vmatpush1.bf16.msra.mxu0 %v960
        %985 = vmatprep.subr.bf16.mxu0 0
        %986 = vmatpush1.bf16.msra.mxu0 0
        %987 = vmatprep.subr.bf16.mxu0 0
        %988 = vmatpush1.bf16.msra.mxu0 0
        %989 = vmatprep.subr.bf16.mxu0 0
        %990 = vmatpush1.bf16.msra.mxu0 0
        %991 = vmatprep.subr.bf16.mxu0 0
        %992 = vmatpush1.bf16.msra.mxu0 0
        %993 = vmatprep.subr.bf16.mxu0 0
        %994 = vmatpush1.bf16.msra.mxu0 0
        %995 = vmatprep.subr.bf16.mxu0 0
        %996 = vmatpush1.bf16.msra.mxu0 0
        %997 = vmatprep.subr.bf16.mxu0 0
        %998 = vmatpush1.bf16.msra.mxu0 0
        %999 = vmatprep.subr.bf16.mxu0 0
        %1000 = vmatpush1.bf16.msra.mxu0 0
        %1001 = vmatprep.mubr.bf16.mxu0 0
        %1002 = vmatmul.mubr.bf16.gmra.mrb[0].mxu0 %v899
        %v1003 = vpop.f32.mrb[0].mxu0
        %v1004 = vadd.f32 %v920, %v1003
        %v1005 = vpop.f32.mrb[0].mxu0
        %v1006 = vpop.f32.mrb[0].mxu0
        %v1007 = vpop.f32.mrb[0].mxu0
        %1008 = vdwg.mxu0
        %v1009 = vadd.f32 %v787, %v1004
        %1010 = vadd.xlane.f32.xlu0 %v1009
        %v1011 = vpop.xlane.xlu0 %1010
        %v1012 = vmul.f32 %v1011, 0.03125
        %v1013 = vsub.f32 %v1009, %v1012
        %v1014 = vmul.f32 %v1013, %v220
        %v1015 = vmul.f32 %v1014, %v1014
        %1016 = vadd.xlane.f32.xlu0 %v1015
        %v1017 = vpop.xlane.xlu0 %1016
        %v1018 = vmul.f32 %v1017, 0.03125
        %v1019 = vadd.f32 %v1018, 1e-05
        %v1020 = vrsqrt.pop %v1019
        %v1021 = vmul.f32 %v1014, %v1020
        %v1022 = vld [vmem:[#allocation7 + $0x40] sm:$0x1]
        %v1023 = vlaneseq
        %v1024 = vshrl.u32 %v1023, 7
        %v1025 = vsub.s32 0, %v1024
        %v1026 = vrot.slane %v1022, %v1025
        %v1027 = vmul.f32 %v1021, %v1026
        %v1028 = vld [vmem:[#allocation7 + $0x48] sm:$0x1]
        %v1029 = vlaneseq
        %v1030 = vshrl.u32 %v1029, 7
        %v1031 = vsub.s32 0, %v1030
        %v1032 = vrot.slane %v1028, %v1031
        %v1033 = vadd.f32 %v1027, %v1032
        %vm1034 = vcmp.lt.s32.totalorder %v217, 10
        %v1035 = vsel %vm1034, 0.0, -1e+30
        %v1036 = vld [vmem:[#allocation7 + $0xd0] sm:$0xff]
        %v1037 = vld [vmem:[#allocation7 + $0xd8] sm:$0xff]
        %v1038 = vpack.c.bf16 %v1037, %v1036
        %v1039 = vld [vmem:[#allocation5 + $0x180] sm:$0xf]
        %v1040 = vld [vmem:[#allocation5 + $0x184] sm:$0xf]
        %v1041 = vld [vmem:[#allocation5 + $0x188] sm:$0xf]
        %v1042 = vld [vmem:[#allocation5 + $0x18c] sm:$0xf]
        %v1043 = vld [vmem:[#allocation5 + $0x190] sm:$0xf]
        %v1044 = vld [vmem:[#allocation5 + $0x194] sm:$0xf]
        %v1045 = vld [vmem:[#allocation5 + $0x198] sm:$0xf]
        %v1046 = vld [vmem:[#allocation5 + $0x19c] sm:$0xf]
        %v1047 = vld [vmem:[#allocation5 + $0x1a0] sm:$0xf]
        %v1048 = vld [vmem:[#allocation5 + $0x1a4] sm:$0xf]
        %v1049 = vld [vmem:[#allocation5 + $0x1a8] sm:$0xf]
        %v1050 = vld [vmem:[#allocation5 + $0x1ac] sm:$0xf]
        %v1051 = vld [vmem:[#allocation5 + $0x1b0] sm:$0xf]
        %v1052 = vld [vmem:[#allocation5 + $0x1b4] sm:$0xf]
        %v1053 = vld [vmem:[#allocation5 + $0x1b8] sm:$0xf]
        %v1054 = vld [vmem:[#allocation5 + $0x1bc] sm:$0xf]
        %v1055 = vld [vmem:[#allocation7 + $0x50] sm:$0x1]
        %v1056 = vlaneseq
        %v1057 = vshrl.u32 %v1056, 7
        %v1058 = vsub.s32 0, %v1057
        %v1059 = vrot.slane %v1055, %v1058
        %v1076 = vunpack.c.l.b16 %v1039
        %v1077 = vunpack.c.l.b16 %v1040
        %v1078 = vunpack.c.l.b16 %v1041
        %v1079 = vunpack.c.l.b16 %v1042
        %v1080 = vunpack.c.l.b16 %v1043
        %v1081 = vunpack.c.l.b16 %v1044
        %v1082 = vunpack.c.l.b16 %v1045
        %v1083 = vunpack.c.l.b16 %v1046
        %v1084 = vunpack.c.l.b16 %v1047
        %v1085 = vunpack.c.l.b16 %v1048
        %v1086 = vunpack.c.l.b16 %v1049
        %v1087 = vunpack.c.l.b16 %v1050
        %v1088 = vunpack.c.l.b16 %v1051
        %v1089 = vunpack.c.l.b16 %v1052
        %v1090 = vunpack.c.l.b16 %v1053
        %v1091 = vunpack.c.l.b16 %v1054
        %v1092 = vpack.c.b16 %v1077, %v1076
        %v1093 = vpack.c.b16 %v1079, %v1078
        %v1094 = vpack.c.b16 %v1081, %v1080
        %v1095 = vpack.c.b16 %v1083, %v1082
        %v1096 = vpack.c.b16 %v1085, %v1084
        %v1097 = vpack.c.b16 %v1087, %v1086
        %v1098 = vpack.c.b16 %v1089, %v1088
        %v1099 = vpack.c.b16 %v1091, %v1090
        %1108 = vmatprep.subr.bf16.mxu0 0
        %1109 = vmatpush1.bf16.msra.mxu0 %v1092
        %1110 = vmatprep.subr.bf16.mxu0 0
        %1111 = vmatpush1.bf16.msra.mxu0 %v1093
        %1112 = vmatprep.subr.bf16.mxu0 0
        %1113 = vmatpush1.bf16.msra.mxu0 %v1094
        %1114 = vmatprep.subr.bf16.mxu0 0
        %1115 = vmatpush1.bf16.msra.mxu0 %v1095
        %1116 = vmatprep.subr.bf16.mxu0 0
        %1117 = vmatpush1.bf16.msra.mxu0 %v1096
        %1118 = vmatprep.subr.bf16.mxu0 0
        %1119 = vmatpush1.bf16.msra.mxu0 %v1097
        %1120 = vmatprep.subr.bf16.mxu0 0
        %1121 = vmatpush1.bf16.msra.mxu0 %v1098
        %1122 = vmatprep.subr.bf16.mxu0 0
        %1123 = vmatpush1.bf16.msra.mxu0 %v1099
        %1124 = vmatprep.subr.bf16.mxu0 0
        %1125 = vmatpush1.bf16.msra.mxu0 0
        %1126 = vmatprep.subr.bf16.mxu0 0
        %1127 = vmatpush1.bf16.msra.mxu0 0
        %1128 = vmatprep.subr.bf16.mxu0 0
        %1129 = vmatpush1.bf16.msra.mxu0 0
        %1130 = vmatprep.subr.bf16.mxu0 0
        %1131 = vmatpush1.bf16.msra.mxu0 0
        %1132 = vmatprep.subr.bf16.mxu0 0
        %1133 = vmatpush1.bf16.msra.mxu0 0
        %1134 = vmatprep.subr.bf16.mxu0 0
        %1135 = vmatpush1.bf16.msra.mxu0 0
        %1136 = vmatprep.subr.bf16.mxu0 0
        %1137 = vmatpush1.bf16.msra.mxu0 0
        %1138 = vmatprep.subr.bf16.mxu0 0
        %1139 = vmatpush1.bf16.msra.mxu0 0
        %1140 = vmatprep.mubr.bf16.mxu0 0
        %1141 = vmatmul.mubr.bf16.gmra.mrb[0].mxu0 %v1038
        %v1142 = vpop.f32.mrb[0].mxu0
        %v1143 = vadd.f32 %v1059, %v1142
        %v1144 = vpop.f32.mrb[0].mxu0
        %v1145 = vpop.f32.mrb[0].mxu0
        %v1146 = vadd.f32 %v1059, %v1145
        %v1147 = vpop.f32.mrb[0].mxu0
        %1148 = vdwg.mxu0
        %v1149 = vld [vmem:[#allocation5 + $0x1c0] sm:$0xf]
        %v1150 = vld [vmem:[#allocation5 + $0x1c4] sm:$0xf]
        %v1151 = vld [vmem:[#allocation5 + $0x1c8] sm:$0xf]
        %v1152 = vld [vmem:[#allocation5 + $0x1cc] sm:$0xf]
        %v1153 = vld [vmem:[#allocation5 + $0x1d0] sm:$0xf]
        %v1154 = vld [vmem:[#allocation5 + $0x1d4] sm:$0xf]
        %v1155 = vld [vmem:[#allocation5 + $0x1d8] sm:$0xf]
        %v1156 = vld [vmem:[#allocation5 + $0x1dc] sm:$0xf]
        %v1157 = vld [vmem:[#allocation5 + $0x1e0] sm:$0xf]
        %v1158 = vld [vmem:[#allocation5 + $0x1e4] sm:$0xf]
        %v1159 = vld [vmem:[#allocation5 + $0x1e8] sm:$0xf]
        %v1160 = vld [vmem:[#allocation5 + $0x1ec] sm:$0xf]
        %v1161 = vld [vmem:[#allocation5 + $0x1f0] sm:$0xf]
        %v1162 = vld [vmem:[#allocation5 + $0x1f4] sm:$0xf]
        %v1163 = vld [vmem:[#allocation5 + $0x1f8] sm:$0xf]
        %v1164 = vld [vmem:[#allocation5 + $0x1fc] sm:$0xf]
        %v1165 = vld [vmem:[#allocation7 + $0x58] sm:$0x1]
        %v1166 = vlaneseq
        %v1167 = vshrl.u32 %v1166, 7
        %v1168 = vsub.s32 0, %v1167
        %v1169 = vrot.slane %v1165, %v1168
        %v1186 = vunpack.c.l.b16 %v1149
        %v1187 = vunpack.c.l.b16 %v1150
        %v1188 = vunpack.c.l.b16 %v1151
        %v1189 = vunpack.c.l.b16 %v1152
        %v1190 = vunpack.c.l.b16 %v1153
        %v1191 = vunpack.c.l.b16 %v1154
        %v1192 = vunpack.c.l.b16 %v1155
        %v1193 = vunpack.c.l.b16 %v1156
        %v1194 = vunpack.c.l.b16 %v1157
        %v1195 = vunpack.c.l.b16 %v1158
        %v1196 = vunpack.c.l.b16 %v1159
        %v1197 = vunpack.c.l.b16 %v1160
        %v1198 = vunpack.c.l.b16 %v1161
        %v1199 = vunpack.c.l.b16 %v1162
        %v1200 = vunpack.c.l.b16 %v1163
        %v1201 = vunpack.c.l.b16 %v1164
        %v1202 = vpack.c.b16 %v1187, %v1186
        %v1203 = vpack.c.b16 %v1189, %v1188
        %v1204 = vpack.c.b16 %v1191, %v1190
        %v1205 = vpack.c.b16 %v1193, %v1192
        %v1206 = vpack.c.b16 %v1195, %v1194
        %v1207 = vpack.c.b16 %v1197, %v1196
        %v1208 = vpack.c.b16 %v1199, %v1198
        %v1209 = vpack.c.b16 %v1201, %v1200
        %1218 = vmatprep.subr.bf16.mxu0 0
        %1219 = vmatpush1.bf16.msra.mxu0 %v1202
        %1220 = vmatprep.subr.bf16.mxu0 0
        %1221 = vmatpush1.bf16.msra.mxu0 %v1203
        %1222 = vmatprep.subr.bf16.mxu0 0
        %1223 = vmatpush1.bf16.msra.mxu0 %v1204
        %1224 = vmatprep.subr.bf16.mxu0 0
        %1225 = vmatpush1.bf16.msra.mxu0 %v1205
        %1226 = vmatprep.subr.bf16.mxu0 0
        %1227 = vmatpush1.bf16.msra.mxu0 %v1206
        %1228 = vmatprep.subr.bf16.mxu0 0
        %1229 = vmatpush1.bf16.msra.mxu0 %v1207
        %1230 = vmatprep.subr.bf16.mxu0 0
        %1231 = vmatpush1.bf16.msra.mxu0 %v1208
        %1232 = vmatprep.subr.bf16.mxu0 0
        %1233 = vmatpush1.bf16.msra.mxu0 %v1209
        %1234 = vmatprep.subr.bf16.mxu0 0
        %1235 = vmatpush1.bf16.msra.mxu0 0
        %1236 = vmatprep.subr.bf16.mxu0 0
        %1237 = vmatpush1.bf16.msra.mxu0 0
        %1238 = vmatprep.subr.bf16.mxu0 0
        %1239 = vmatpush1.bf16.msra.mxu0 0
        %1240 = vmatprep.subr.bf16.mxu0 0
        %1241 = vmatpush1.bf16.msra.mxu0 0
        %1242 = vmatprep.subr.bf16.mxu0 0
        %1243 = vmatpush1.bf16.msra.mxu0 0
        %1244 = vmatprep.subr.bf16.mxu0 0
        %1245 = vmatpush1.bf16.msra.mxu0 0
        %1246 = vmatprep.subr.bf16.mxu0 0
        %1247 = vmatpush1.bf16.msra.mxu0 0
        %1248 = vmatprep.subr.bf16.mxu0 0
        %1249 = vmatpush1.bf16.msra.mxu0 0
        %1250 = vmatprep.mubr.bf16.mxu0 0
        %1251 = vmatmul.mubr.bf16.gmra.mrb[0].mxu0 %v1038
        %v1252 = vpop.f32.mrb[0].mxu0
        %v1253 = vadd.f32 %v1169, %v1252
        %v1254 = vpop.f32.mrb[0].mxu0
        %v1255 = vpop.f32.mrb[0].mxu0
        %v1256 = vadd.f32 %v1169, %v1255
        %v1257 = vpop.f32.mrb[0].mxu0
        %1258 = vdwg.mxu0
        %v1259 = vld [vmem:[#allocation5 + $0x200] sm:$0xf]
        %v1260 = vld [vmem:[#allocation5 + $0x204] sm:$0xf]
        %v1261 = vld [vmem:[#allocation5 + $0x208] sm:$0xf]
        %v1262 = vld [vmem:[#allocation5 + $0x20c] sm:$0xf]
        %v1263 = vld [vmem:[#allocation5 + $0x210] sm:$0xf]
        %v1264 = vld [vmem:[#allocation5 + $0x214] sm:$0xf]
        %v1265 = vld [vmem:[#allocation5 + $0x218] sm:$0xf]
        %v1266 = vld [vmem:[#allocation5 + $0x21c] sm:$0xf]
        %v1267 = vld [vmem:[#allocation5 + $0x220] sm:$0xf]
        %v1268 = vld [vmem:[#allocation5 + $0x224] sm:$0xf]
        %v1269 = vld [vmem:[#allocation5 + $0x228] sm:$0xf]
        %v1270 = vld [vmem:[#allocation5 + $0x22c] sm:$0xf]
        %v1271 = vld [vmem:[#allocation5 + $0x230] sm:$0xf]
        %v1272 = vld [vmem:[#allocation5 + $0x234] sm:$0xf]
        %v1273 = vld [vmem:[#allocation5 + $0x238] sm:$0xf]
        %v1274 = vld [vmem:[#allocation5 + $0x23c] sm:$0xf]
        %v1275 = vld [vmem:[#allocation7 + $0x60] sm:$0x1]
        %v1276 = vlaneseq
        %v1277 = vshrl.u32 %v1276, 7
        %v1278 = vsub.s32 0, %v1277
        %v1279 = vrot.slane %v1275, %v1278
        %v1296 = vunpack.c.l.b16 %v1259
        %v1297 = vunpack.c.l.b16 %v1260
        %v1298 = vunpack.c.l.b16 %v1261
        %v1299 = vunpack.c.l.b16 %v1262
        %v1300 = vunpack.c.l.b16 %v1263
        %v1301 = vunpack.c.l.b16 %v1264
        %v1302 = vunpack.c.l.b16 %v1265
        %v1303 = vunpack.c.l.b16 %v1266
        %v1304 = vunpack.c.l.b16 %v1267
        %v1305 = vunpack.c.l.b16 %v1268
        %v1306 = vunpack.c.l.b16 %v1269
        %v1307 = vunpack.c.l.b16 %v1270
        %v1308 = vunpack.c.l.b16 %v1271
        %v1309 = vunpack.c.l.b16 %v1272
        %v1310 = vunpack.c.l.b16 %v1273
        %v1311 = vunpack.c.l.b16 %v1274
        %v1312 = vpack.c.b16 %v1297, %v1296
        %v1313 = vpack.c.b16 %v1299, %v1298
        %v1314 = vpack.c.b16 %v1301, %v1300
        %v1315 = vpack.c.b16 %v1303, %v1302
        %v1316 = vpack.c.b16 %v1305, %v1304
        %v1317 = vpack.c.b16 %v1307, %v1306
        %v1318 = vpack.c.b16 %v1309, %v1308
        %v1319 = vpack.c.b16 %v1311, %v1310
        %1328 = vmatprep.subr.bf16.mxu0 0
        %1329 = vmatpush1.bf16.msra.mxu0 %v1312
        %1330 = vmatprep.subr.bf16.mxu0 0
        %1331 = vmatpush1.bf16.msra.mxu0 %v1313
        %1332 = vmatprep.subr.bf16.mxu0 0
        %1333 = vmatpush1.bf16.msra.mxu0 %v1314
        %1334 = vmatprep.subr.bf16.mxu0 0
        %1335 = vmatpush1.bf16.msra.mxu0 %v1315
        %1336 = vmatprep.subr.bf16.mxu0 0
        %1337 = vmatpush1.bf16.msra.mxu0 %v1316
        %1338 = vmatprep.subr.bf16.mxu0 0
        %1339 = vmatpush1.bf16.msra.mxu0 %v1317
        %1340 = vmatprep.subr.bf16.mxu0 0
        %1341 = vmatpush1.bf16.msra.mxu0 %v1318
        %1342 = vmatprep.subr.bf16.mxu0 0
        %1343 = vmatpush1.bf16.msra.mxu0 %v1319
        %1344 = vmatprep.subr.bf16.mxu0 0
        %1345 = vmatpush1.bf16.msra.mxu0 0
        %1346 = vmatprep.subr.bf16.mxu0 0
        %1347 = vmatpush1.bf16.msra.mxu0 0
        %1348 = vmatprep.subr.bf16.mxu0 0
        %1349 = vmatpush1.bf16.msra.mxu0 0
        %1350 = vmatprep.subr.bf16.mxu0 0
        %1351 = vmatpush1.bf16.msra.mxu0 0
        %1352 = vmatprep.subr.bf16.mxu0 0
        %1353 = vmatpush1.bf16.msra.mxu0 0
        %1354 = vmatprep.subr.bf16.mxu0 0
        %1355 = vmatpush1.bf16.msra.mxu0 0
        %1356 = vmatprep.subr.bf16.mxu0 0
        %1357 = vmatpush1.bf16.msra.mxu0 0
        %1358 = vmatprep.subr.bf16.mxu0 0
        %1359 = vmatpush1.bf16.msra.mxu0 0
        %1360 = vmatprep.mubr.bf16.mxu0 0
        %1361 = vmatmul.mubr.bf16.gmra.mrb[0].mxu0 %v1038
        %v1362 = vpop.f32.mrb[0].mxu0
        %v1363 = vadd.f32 %v1279, %v1362
        %v1364 = vpop.f32.mrb[0].mxu0
        %v1365 = vpop.f32.mrb[0].mxu0
        %v1366 = vadd.f32 %v1279, %v1365
        %v1367 = vpop.f32.mrb[0].mxu0
        %1368 = vdwg.mxu0
        %v1369 = vpack.c.bf16 %v1146, %v1143
        %v1370 = vpack.c.bf16 %v1256, %v1253
        %1371 = vmatprep.subr.bf16.mxu0 0
        %1372 = vmatpush1.bf16.xpose.msra.mxu0 %v1370
        %1373 = vmatprep.subr.bf16.mxu0 0
        %1374 = vmatpush1.bf16.xpose.msra.mxu0 0
        %1375 = vmatprep.subr.bf16.mxu0 0
        %1376 = vmatpush1.bf16.xpose.msra.mxu0 0
        %1377 = vmatprep.subr.bf16.mxu0 0
        %1378 = vmatpush1.bf16.xpose.msra.mxu0 0
        %1379 = vmatprep.subr.bf16.mxu0 0
        %1380 = vmatpush1.bf16.xpose.msra.mxu0 0
        %1381 = vmatprep.subr.bf16.mxu0 0
        %1382 = vmatpush1.bf16.xpose.msra.mxu0 0
        %1383 = vmatprep.subr.bf16.mxu0 0
        %1384 = vmatpush1.bf16.xpose.msra.mxu0 0
        %1385 = vmatprep.subr.bf16.mxu0 0
        %1386 = vmatpush1.bf16.xpose.msra.mxu0 0
        %1387 = vmatprep.subr.bf16.mxu0 0
        %1388 = vmatpush1.bf16.xpose.msra.mxu0 0
        %1389 = vmatprep.subr.bf16.mxu0 0
        %1390 = vmatpush1.bf16.xpose.msra.mxu0 0
        %1391 = vmatprep.subr.bf16.mxu0 0
        %1392 = vmatpush1.bf16.xpose.msra.mxu0 0
        %1393 = vmatprep.subr.bf16.mxu0 0
        %1394 = vmatpush1.bf16.xpose.msra.mxu0 0
        %1395 = vmatprep.subr.bf16.mxu0 0
        %1396 = vmatpush1.bf16.xpose.msra.mxu0 0
        %1397 = vmatprep.subr.bf16.mxu0 0
        %1398 = vmatpush1.bf16.xpose.msra.mxu0 0
        %1399 = vmatprep.subr.bf16.mxu0 0
        %1400 = vmatpush1.bf16.xpose.msra.mxu0 0
        %1401 = vmatprep.subr.bf16.mxu0 0
        %1402 = vmatpush1.bf16.xpose.msra.mxu0 0
        %1403 = vmatprep.mubr.bf16.mxu0 0
        %1404 = vmatmul.mubr.bf16.gmra.mrb[0].mxu0 %v1369
        %v1405 = vpop.f32.mrb[0].mxu0
        %v1406 = vadd.f32 %v1035, %v1405
        %v1407 = vpop.f32.mrb[0].mxu0
        %v1408 = vpop.f32.mrb[0].mxu0
        %v1409 = vadd.f32 %v1035, %v1408
        %v1410 = vpop.f32.mrb[0].mxu0
        %1411 = vdwg.mxu0
        %vm1412 = vcmask 130048
        %v1413 = vsel %vm1412, %v1406, -inf
        %1414 = vmax.xlane.f32.xlu0 %v1413
        %v1415 = vpop.xlane.xlu0 %1414
        %v1416 = vsel %vm1412, %v1409, -inf
        %1417 = vmax.xlane.f32.xlu0 %v1416
        %v1418 = vpop.xlane.xlu0 %1417
        %v1419 = vsub.f32 %v1406, %v1415
        %v1420 = vsub.f32 %v1409, %v1418
        %v1421 = vmul.f32 %v1419, 1.442695
        %v1422 = vpow.pop %v1421
        %v1423 = vmul.f32 %v1420, 1.442695
        %v1424 = vpow.pop %v1423
        %v1425 = vsel %vm1412, %v1422, 0.0
        %1426 = vadd.xlane.f32.xlu0 %v1425
        %v1427 = vpop.xlane.xlu0 %1426
        %v1428 = vsel %vm1412, %v1424, 0.0
        %1429 = vadd.xlane.f32.xlu0 %v1428
        %v1430 = vpop.xlane.xlu0 %1429
        %v1431 = vrcp.pop %v1427
        %v1432 = vrcp.pop %v1430
        %v1433 = vmul.f32 %v1422, %v1431
        %v1434 = vmul.f32 %v1424, %v1432
        %v1435 = vpack.c.bf16 %v1434, %v1433
        %v1436 = vpack.c.bf16 %v1366, %v1363
        %v1438 = vsel %vm1412, %v1435, 0
        %1440 = vmatprep.subr.bf16.mxu0 0
        %1441 = vmatpush1.bf16.msra.mxu0 %v1436
        %1442 = vmatprep.subr.bf16.mxu0 0
        %1443 = vmatpush1.bf16.msra.mxu0 0
        %1444 = vmatprep.subr.bf16.mxu0 0
        %1445 = vmatpush1.bf16.msra.mxu0 0
        %1446 = vmatprep.subr.bf16.mxu0 0
        %1447 = vmatpush1.bf16.msra.mxu0 0
        %1448 = vmatprep.subr.bf16.mxu0 0
        %1449 = vmatpush1.bf16.msra.mxu0 0
        %1450 = vmatprep.subr.bf16.mxu0 0
        %1451 = vmatpush1.bf16.msra.mxu0 0
        %1452 = vmatprep.subr.bf16.mxu0 0
        %1453 = vmatpush1.bf16.msra.mxu0 0
        %1454 = vmatprep.subr.bf16.mxu0 0
        %1455 = vmatpush1.bf16.msra.mxu0 0
        %1456 = vmatprep.subr.bf16.mxu0 0
        %1457 = vmatpush1.bf16.msra.mxu0 0
        %1458 = vmatprep.subr.bf16.mxu0 0
        %1459 = vmatpush1.bf16.msra.mxu0 0
        %1460 = vmatprep.subr.bf16.mxu0 0
        %1461 = vmatpush1.bf16.msra.mxu0 0
        %1462 = vmatprep.subr.bf16.mxu0 0
        %1463 = vmatpush1.bf16.msra.mxu0 0
        %1464 = vmatprep.subr.bf16.mxu0 0
        %1465 = vmatpush1.bf16.msra.mxu0 0
        %1466 = vmatprep.subr.bf16.mxu0 0
        %1467 = vmatpush1.bf16.msra.mxu0 0
        %1468 = vmatprep.subr.bf16.mxu0 0
        %1469 = vmatpush1.bf16.msra.mxu0 0
        %1470 = vmatprep.subr.bf16.mxu0 0
        %1471 = vmatpush1.bf16.msra.mxu0 0
        %1472 = vmatprep.mubr.bf16.mxu0 0
        %1473 = vmatmul.mubr.bf16.gmra.mrb[0].mxu0 %v1438
        %v1474 = vpop.f32.mrb[0].mxu0
        %v1475 = vadd.f32 0.0, %v1474
        %v1476 = vpop.f32.mrb[0].mxu0
        %v1477 = vpop.f32.mrb[0].mxu0
        %v1478 = vadd.f32 0.0, %v1477
        %v1479 = vpop.f32.mrb[0].mxu0
        %1480 = vdwg.mxu0
        %v1481 = vpack.c.bf16 %v1478, %v1475
        %v1482 = vld [vmem:[#allocation5 + $0x240] sm:$0xf]
        %v1483 = vld [vmem:[#allocation5 + $0x244] sm:$0xf]
        %v1484 = vld [vmem:[#allocation5 + $0x248] sm:$0xf]
        %v1485 = vld [vmem:[#allocation5 + $0x24c] sm:$0xf]
        %v1486 = vld [vmem:[#allocation5 + $0x250] sm:$0xf]
        %v1487 = vld [vmem:[#allocation5 + $0x254] sm:$0xf]
        %v1488 = vld [vmem:[#allocation5 + $0x258] sm:$0xf]
        %v1489 = vld [vmem:[#allocation5 + $0x25c] sm:$0xf]
        %v1490 = vld [vmem:[#allocation5 + $0x260] sm:$0xf]
        %v1491 = vld [vmem:[#allocation5 + $0x264] sm:$0xf]
        %v1492 = vld [vmem:[#allocation5 + $0x268] sm:$0xf]
        %v1493 = vld [vmem:[#allocation5 + $0x26c] sm:$0xf]
        %v1494 = vld [vmem:[#allocation5 + $0x270] sm:$0xf]
        %v1495 = vld [vmem:[#allocation5 + $0x274] sm:$0xf]
        %v1496 = vld [vmem:[#allocation5 + $0x278] sm:$0xf]
        %v1497 = vld [vmem:[#allocation5 + $0x27c] sm:$0xf]
        %v1498 = vld [vmem:[#allocation7 + $0x68] sm:$0x1]
        %v1499 = vlaneseq
        %v1500 = vshrl.u32 %v1499, 7
        %v1501 = vsub.s32 0, %v1500
        %v1502 = vrot.slane %v1498, %v1501
        %v1519 = vunpack.c.l.b16 %v1482
        %v1520 = vunpack.c.l.b16 %v1483
        %v1521 = vunpack.c.l.b16 %v1484
        %v1522 = vunpack.c.l.b16 %v1485
        %v1523 = vunpack.c.l.b16 %v1486
        %v1524 = vunpack.c.l.b16 %v1487
        %v1525 = vunpack.c.l.b16 %v1488
        %v1526 = vunpack.c.l.b16 %v1489
        %v1527 = vunpack.c.l.b16 %v1490
        %v1528 = vunpack.c.l.b16 %v1491
        %v1529 = vunpack.c.l.b16 %v1492
        %v1530 = vunpack.c.l.b16 %v1493
        %v1531 = vunpack.c.l.b16 %v1494
        %v1532 = vunpack.c.l.b16 %v1495
        %v1533 = vunpack.c.l.b16 %v1496
        %v1534 = vunpack.c.l.b16 %v1497
        %v1535 = vpack.c.b16 %v1520, %v1519
        %v1536 = vpack.c.b16 %v1522, %v1521
        %v1537 = vpack.c.b16 %v1524, %v1523
        %v1538 = vpack.c.b16 %v1526, %v1525
        %v1539 = vpack.c.b16 %v1528, %v1527
        %v1540 = vpack.c.b16 %v1530, %v1529
        %v1541 = vpack.c.b16 %v1532, %v1531
        %v1542 = vpack.c.b16 %v1534, %v1533
        %1551 = vmatprep.subr.bf16.mxu0 0
        %1552 = vmatpush1.bf16.msra.mxu0 %v1535
        %1553 = vmatprep.subr.bf16.mxu0 0
        %1554 = vmatpush1.bf16.msra.mxu0 %v1536
        %1555 = vmatprep.subr.bf16.mxu0 0
        %1556 = vmatpush1.bf16.msra.mxu0 %v1537
        %1557 = vmatprep.subr.bf16.mxu0 0
        %1558 = vmatpush1.bf16.msra.mxu0 %v1538
        %1559 = vmatprep.subr.bf16.mxu0 0
        %1560 = vmatpush1.bf16.msra.mxu0 %v1539
        %1561 = vmatprep.subr.bf16.mxu0 0
        %1562 = vmatpush1.bf16.msra.mxu0 %v1540
        %1563 = vmatprep.subr.bf16.mxu0 0
        %1564 = vmatpush1.bf16.msra.mxu0 %v1541
        %1565 = vmatprep.subr.bf16.mxu0 0
        %1566 = vmatpush1.bf16.msra.mxu0 %v1542
        %1567 = vmatprep.subr.bf16.mxu0 0
        %1568 = vmatpush1.bf16.msra.mxu0 0
        %1569 = vmatprep.subr.bf16.mxu0 0
        %1570 = vmatpush1.bf16.msra.mxu0 0
        %1571 = vmatprep.subr.bf16.mxu0 0
        %1572 = vmatpush1.bf16.msra.mxu0 0
        %1573 = vmatprep.subr.bf16.mxu0 0
        %1574 = vmatpush1.bf16.msra.mxu0 0
        %1575 = vmatprep.subr.bf16.mxu0 0
        %1576 = vmatpush1.bf16.msra.mxu0 0
        %1577 = vmatprep.subr.bf16.mxu0 0
        %1578 = vmatpush1.bf16.msra.mxu0 0
        %1579 = vmatprep.subr.bf16.mxu0 0
        %1580 = vmatpush1.bf16.msra.mxu0 0
        %1581 = vmatprep.subr.bf16.mxu0 0
        %1582 = vmatpush1.bf16.msra.mxu0 0
        %1583 = vmatprep.mubr.bf16.mxu0 0
        %1584 = vmatmul.mubr.bf16.gmra.mrb[0].mxu0 %v1481
        %v1585 = vpop.f32.mrb[0].mxu0
        %v1586 = vadd.f32 %v1502, %v1585
        %v1587 = vpop.f32.mrb[0].mxu0
        %v1588 = vpop.f32.mrb[0].mxu0
        %v1589 = vadd.f32 %v1502, %v1588
        %v1590 = vpop.f32.mrb[0].mxu0
        %1591 = vdwg.mxu0
        %v1592 = vadd.f32 %v1036, %v1586
        %v1593 = vadd.f32 %v1037, %v1589
        %1594 = vadd.xlane.f32.xlu0 %v1592
        %v1595 = vpop.xlane.xlu0 %1594
        %1596 = vadd.xlane.f32.xlu0 %v1593
        %v1597 = vpop.xlane.xlu0 %1596
        %v1598 = vmul.f32 %v1595, 0.03125
        %v1599 = vmul.f32 %v1597, 0.03125
        %v1600 = vsub.f32 %v1592, %v1598
        %v1601 = vsub.f32 %v1593, %v1599
        %v1602 = vmul.f32 %v1600, %v220
        %v1603 = vmul.f32 %v1601, %v220
        %v1604 = vmul.f32 %v1602, %v1602
        %v1605 = vmul.f32 %v1603, %v1603
        %1606 = vadd.xlane.f32.xlu0 %v1604
        %v1607 = vpop.xlane.xlu0 %1606
        %1608 = vadd.xlane.f32.xlu0 %v1605
        %v1609 = vpop.xlane.xlu0 %1608
        %v1610 = vmul.f32 %v1607, 0.03125
        %v1611 = vmul.f32 %v1609, 0.03125
        %v1612 = vadd.f32 %v1610, 1e-05
        %v1613 = vadd.f32 %v1611, 1e-05
        %v1614 = vrsqrt.pop %v1612
        %v1615 = vrsqrt.pop %v1613
        %v1616 = vmul.f32 %v1602, %v1614
        %v1617 = vmul.f32 %v1603, %v1615
        %v1618 = vld [vmem:[#allocation7 + $0x70] sm:$0x1]
        %v1619 = vlaneseq
        %v1620 = vshrl.u32 %v1619, 7
        %v1621 = vsub.s32 0, %v1620
        %v1622 = vrot.slane %v1618, %v1621
        %v1623 = vmul.f32 %v1616, %v1622
        %v1624 = vmul.f32 %v1617, %v1622
        %v1625 = vld [vmem:[#allocation7 + $0x78] sm:$0x1]
        %v1626 = vlaneseq
        %v1627 = vshrl.u32 %v1626, 7
        %v1628 = vsub.s32 0, %v1627
        %v1629 = vrot.slane %v1625, %v1628
        %v1630 = vadd.f32 %v1623, %v1629
        %v1631 = vadd.f32 %v1624, %v1629
        %v1632 = vpack.c.bf16 %v1631, %v1630
        %v1633 = vld [vmem:[#allocation5 + $0x280] sm:$0xf]
        %v1634 = vld [vmem:[#allocation5 + $0x284] sm:$0xf]
        %v1635 = vld [vmem:[#allocation5 + $0x288] sm:$0xf]
        %v1636 = vld [vmem:[#allocation5 + $0x28c] sm:$0xf]
        %v1637 = vld [vmem:[#allocation5 + $0x290] sm:$0xf]
        %v1638 = vld [vmem:[#allocation5 + $0x294] sm:$0xf]
        %v1639 = vld [vmem:[#allocation5 + $0x298] sm:$0xf]
        %v1640 = vld [vmem:[#allocation5 + $0x29c] sm:$0xf]
        %v1641 = vld [vmem:[#allocation5 + $0x2a0] sm:$0xf]
        %v1642 = vld [vmem:[#allocation5 + $0x2a4] sm:$0xf]
        %v1643 = vld [vmem:[#allocation5 + $0x2a8] sm:$0xf]
        %v1644 = vld [vmem:[#allocation5 + $0x2ac] sm:$0xf]
        %v1645 = vld [vmem:[#allocation5 + $0x2b0] sm:$0xf]
        %v1646 = vld [vmem:[#allocation5 + $0x2b4] sm:$0xf]
        %v1647 = vld [vmem:[#allocation5 + $0x2b8] sm:$0xf]
        %v1648 = vld [vmem:[#allocation5 + $0x2bc] sm:$0xf]
        %v1649 = vld [vmem:[#allocation7 + $0x80] sm:$0x1]
        %v1650 = vlaneseq
        %v1651 = vshrl.u32 %v1650, 7
        %v1652 = vsub.s32 0, %v1651
        %v1653 = vrot.slane %v1649, %v1652
        %v1670 = vunpack.c.l.b16 %v1633
        %v1671 = vunpack.c.l.b16 %v1634
        %v1672 = vunpack.c.l.b16 %v1635
        %v1673 = vunpack.c.l.b16 %v1636
        %v1674 = vunpack.c.l.b16 %v1637
        %v1675 = vunpack.c.l.b16 %v1638
        %v1676 = vunpack.c.l.b16 %v1639
        %v1677 = vunpack.c.l.b16 %v1640
        %v1678 = vunpack.c.l.b16 %v1641
        %v1679 = vunpack.c.l.b16 %v1642
        %v1680 = vunpack.c.l.b16 %v1643
        %v1681 = vunpack.c.l.b16 %v1644
        %v1682 = vunpack.c.l.b16 %v1645
        %v1683 = vunpack.c.l.b16 %v1646
        %v1684 = vunpack.c.l.b16 %v1647
        %v1685 = vunpack.c.l.b16 %v1648
        %v1686 = vpack.c.b16 %v1671, %v1670
        %v1687 = vpack.c.b16 %v1673, %v1672
        %v1688 = vpack.c.b16 %v1675, %v1674
        %v1689 = vpack.c.b16 %v1677, %v1676
        %v1690 = vpack.c.b16 %v1679, %v1678
        %v1691 = vpack.c.b16 %v1681, %v1680
        %v1692 = vpack.c.b16 %v1683, %v1682
        %v1693 = vpack.c.b16 %v1685, %v1684
        %1702 = vmatprep.subr.bf16.mxu0 0
        %1703 = vmatpush1.bf16.msra.mxu0 %v1686
        %1704 = vmatprep.subr.bf16.mxu0 0
        %1705 = vmatpush1.bf16.msra.mxu0 %v1687
        %1706 = vmatprep.subr.bf16.mxu0 0
        %1707 = vmatpush1.bf16.msra.mxu0 %v1688
        %1708 = vmatprep.subr.bf16.mxu0 0
        %1709 = vmatpush1.bf16.msra.mxu0 %v1689
        %1710 = vmatprep.subr.bf16.mxu0 0
        %1711 = vmatpush1.bf16.msra.mxu0 %v1690
        %1712 = vmatprep.subr.bf16.mxu0 0
        %1713 = vmatpush1.bf16.msra.mxu0 %v1691
        %1714 = vmatprep.subr.bf16.mxu0 0
        %1715 = vmatpush1.bf16.msra.mxu0 %v1692
        %1716 = vmatprep.subr.bf16.mxu0 0
        %1717 = vmatpush1.bf16.msra.mxu0 %v1693
        %1718 = vmatprep.subr.bf16.mxu0 0
        %1719 = vmatpush1.bf16.msra.mxu0 0
        %1720 = vmatprep.subr.bf16.mxu0 0
        %1721 = vmatpush1.bf16.msra.mxu0 0
        %1722 = vmatprep.subr.bf16.mxu0 0
        %1723 = vmatpush1.bf16.msra.mxu0 0
        %1724 = vmatprep.subr.bf16.mxu0 0
        %1725 = vmatpush1.bf16.msra.mxu0 0
        %1726 = vmatprep.subr.bf16.mxu0 0
        %1727 = vmatpush1.bf16.msra.mxu0 0
        %1728 = vmatprep.subr.bf16.mxu0 0
        %1729 = vmatpush1.bf16.msra.mxu0 0
        %1730 = vmatprep.subr.bf16.mxu0 0
        %1731 = vmatpush1.bf16.msra.mxu0 0
        %1732 = vmatprep.subr.bf16.mxu0 0
        %1733 = vmatpush1.bf16.msra.mxu0 0
        %1734 = vmatprep.mubr.bf16.mxu0 0
        %1735 = vmatmul.mubr.bf16.gmra.mrb[0].mxu0 %v1632
        %v1736 = vpop.f32.mrb[0].mxu0
        %v1737 = vadd.f32 %v1653, %v1736
        %v1738 = vpop.f32.mrb[0].mxu0
        %v1739 = vpop.f32.mrb[0].mxu0
        %v1740 = vadd.f32 %v1653, %v1739
        %v1741 = vpop.f32.mrb[0].mxu0
        %1742 = vdwg.mxu0
        %v1743 = vpack.c.bf16 %v1033, %v1033
        %v1744 = vld [vmem:[#allocation5 + $0x2c0] sm:$0xf]
        %v1745 = vld [vmem:[#allocation5 + $0x2c4] sm:$0xf]
        %v1746 = vld [vmem:[#allocation5 + $0x2c8] sm:$0xf]
        %v1747 = vld [vmem:[#allocation5 + $0x2cc] sm:$0xf]
        %v1748 = vld [vmem:[#allocation5 + $0x2d0] sm:$0xf]
        %v1749 = vld [vmem:[#allocation5 + $0x2d4] sm:$0xf]
        %v1750 = vld [vmem:[#allocation5 + $0x2d8] sm:$0xf]
        %v1751 = vld [vmem:[#allocation5 + $0x2dc] sm:$0xf]
        %v1752 = vld [vmem:[#allocation5 + $0x2e0] sm:$0xf]
        %v1753 = vld [vmem:[#allocation5 + $0x2e4] sm:$0xf]
        %v1754 = vld [vmem:[#allocation5 + $0x2e8] sm:$0xf]
        %v1755 = vld [vmem:[#allocation5 + $0x2ec] sm:$0xf]
        %v1756 = vld [vmem:[#allocation5 + $0x2f0] sm:$0xf]
        %v1757 = vld [vmem:[#allocation5 + $0x2f4] sm:$0xf]
        %v1758 = vld [vmem:[#allocation5 + $0x2f8] sm:$0xf]
        %v1759 = vld [vmem:[#allocation5 + $0x2fc] sm:$0xf]
        %v1760 = vld [vmem:[#allocation7 + $0x88] sm:$0x1]
        %v1761 = vlaneseq
        %v1762 = vshrl.u32 %v1761, 7
        %v1763 = vsub.s32 0, %v1762
        %v1764 = vrot.slane %v1760, %v1763
        %v1781 = vunpack.c.l.b16 %v1744
        %v1782 = vunpack.c.l.b16 %v1745
        %v1783 = vunpack.c.l.b16 %v1746
        %v1784 = vunpack.c.l.b16 %v1747
        %v1785 = vunpack.c.l.b16 %v1748
        %v1786 = vunpack.c.l.b16 %v1749
        %v1787 = vunpack.c.l.b16 %v1750
        %v1788 = vunpack.c.l.b16 %v1751
        %v1789 = vunpack.c.l.b16 %v1752
        %v1790 = vunpack.c.l.b16 %v1753
        %v1791 = vunpack.c.l.b16 %v1754
        %v1792 = vunpack.c.l.b16 %v1755
        %v1793 = vunpack.c.l.b16 %v1756
        %v1794 = vunpack.c.l.b16 %v1757
        %v1795 = vunpack.c.l.b16 %v1758
        %v1796 = vunpack.c.l.b16 %v1759
        %v1797 = vpack.c.b16 %v1782, %v1781
        %v1798 = vpack.c.b16 %v1784, %v1783
        %v1799 = vpack.c.b16 %v1786, %v1785
        %v1800 = vpack.c.b16 %v1788, %v1787
        %v1801 = vpack.c.b16 %v1790, %v1789
        %v1802 = vpack.c.b16 %v1792, %v1791
        %v1803 = vpack.c.b16 %v1794, %v1793
        %v1804 = vpack.c.b16 %v1796, %v1795
        %1813 = vmatprep.subr.bf16.mxu0 0
        %1814 = vmatpush1.bf16.msra.mxu0 %v1797
        %1815 = vmatprep.subr.bf16.mxu0 0
        %1816 = vmatpush1.bf16.msra.mxu0 %v1798
        %1817 = vmatprep.subr.bf16.mxu0 0
        %1818 = vmatpush1.bf16.msra.mxu0 %v1799
        %1819 = vmatprep.subr.bf16.mxu0 0
        %1820 = vmatpush1.bf16.msra.mxu0 %v1800
        %1821 = vmatprep.subr.bf16.mxu0 0
        %1822 = vmatpush1.bf16.msra.mxu0 %v1801
        %1823 = vmatprep.subr.bf16.mxu0 0
        %1824 = vmatpush1.bf16.msra.mxu0 %v1802
        %1825 = vmatprep.subr.bf16.mxu0 0
        %1826 = vmatpush1.bf16.msra.mxu0 %v1803
        %1827 = vmatprep.subr.bf16.mxu0 0
        %1828 = vmatpush1.bf16.msra.mxu0 %v1804
        %1829 = vmatprep.subr.bf16.mxu0 0
        %1830 = vmatpush1.bf16.msra.mxu0 0
        %1831 = vmatprep.subr.bf16.mxu0 0
        %1832 = vmatpush1.bf16.msra.mxu0 0
        %1833 = vmatprep.subr.bf16.mxu0 0
        %1834 = vmatpush1.bf16.msra.mxu0 0
        %1835 = vmatprep.subr.bf16.mxu0 0
        %1836 = vmatpush1.bf16.msra.mxu0 0
        %1837 = vmatprep.subr.bf16.mxu0 0
        %1838 = vmatpush1.bf16.msra.mxu0 0
        %1839 = vmatprep.subr.bf16.mxu0 0
        %1840 = vmatpush1.bf16.msra.mxu0 0
        %1841 = vmatprep.subr.bf16.mxu0 0
        %1842 = vmatpush1.bf16.msra.mxu0 0
        %1843 = vmatprep.subr.bf16.mxu0 0
        %1844 = vmatpush1.bf16.msra.mxu0 0
        %1845 = vmatprep.mubr.bf16.mxu0 0
        %1846 = vmatmul.mubr.bf16.gmra.mrb[0].mxu0 %v1743
        %v1847 = vpop.f32.mrb[0].mxu0
        %v1848 = vadd.f32 %v1764, %v1847
        %v1849 = vpop.f32.mrb[0].mxu0
        %v1850 = vpop.f32.mrb[0].mxu0
        %v1851 = vpop.f32.mrb[0].mxu0
        %1852 = vdwg.mxu0
        %v1853 = vld [vmem:[#allocation5 + $0x300] sm:$0xf]
        %v1854 = vld [vmem:[#allocation5 + $0x304] sm:$0xf]
        %v1855 = vld [vmem:[#allocation5 + $0x308] sm:$0xf]
        %v1856 = vld [vmem:[#allocation5 + $0x30c] sm:$0xf]
        %v1857 = vld [vmem:[#allocation5 + $0x310] sm:$0xf]
        %v1858 = vld [vmem:[#allocation5 + $0x314] sm:$0xf]
        %v1859 = vld [vmem:[#allocation5 + $0x318] sm:$0xf]
        %v1860 = vld [vmem:[#allocation5 + $0x31c] sm:$0xf]
        %v1861 = vld [vmem:[#allocation5 + $0x320] sm:$0xf]
        %v1862 = vld [vmem:[#allocation5 + $0x324] sm:$0xf]
        %v1863 = vld [vmem:[#allocation5 + $0x328] sm:$0xf]
        %v1864 = vld [vmem:[#allocation5 + $0x32c] sm:$0xf]
        %v1865 = vld [vmem:[#allocation5 + $0x330] sm:$0xf]
        %v1866 = vld [vmem:[#allocation5 + $0x334] sm:$0xf]
        %v1867 = vld [vmem:[#allocation5 + $0x338] sm:$0xf]
        %v1868 = vld [vmem:[#allocation5 + $0x33c] sm:$0xf]
        %v1869 = vld [vmem:[#allocation7 + $0x90] sm:$0x1]
        %v1870 = vlaneseq
        %v1871 = vshrl.u32 %v1870, 7
        %v1872 = vsub.s32 0, %v1871
        %v1873 = vrot.slane %v1869, %v1872
        %v1890 = vunpack.c.l.b16 %v1853
        %v1891 = vunpack.c.l.b16 %v1854
        %v1892 = vunpack.c.l.b16 %v1855
        %v1893 = vunpack.c.l.b16 %v1856
        %v1894 = vunpack.c.l.b16 %v1857
        %v1895 = vunpack.c.l.b16 %v1858
        %v1896 = vunpack.c.l.b16 %v1859
        %v1897 = vunpack.c.l.b16 %v1860
        %v1898 = vunpack.c.l.b16 %v1861
        %v1899 = vunpack.c.l.b16 %v1862
        %v1900 = vunpack.c.l.b16 %v1863
        %v1901 = vunpack.c.l.b16 %v1864
        %v1902 = vunpack.c.l.b16 %v1865
        %v1903 = vunpack.c.l.b16 %v1866
        %v1904 = vunpack.c.l.b16 %v1867
        %v1905 = vunpack.c.l.b16 %v1868
        %v1906 = vpack.c.b16 %v1891, %v1890
        %v1907 = vpack.c.b16 %v1893, %v1892
        %v1908 = vpack.c.b16 %v1895, %v1894
        %v1909 = vpack.c.b16 %v1897, %v1896
        %v1910 = vpack.c.b16 %v1899, %v1898
        %v1911 = vpack.c.b16 %v1901, %v1900
        %v1912 = vpack.c.b16 %v1903, %v1902
        %v1913 = vpack.c.b16 %v1905, %v1904
        %1922 = vmatprep.subr.bf16.mxu0 0
        %1923 = vmatpush1.bf16.msra.mxu0 %v1906
        %1924 = vmatprep.subr.bf16.mxu0 0
        %1925 = vmatpush1.bf16.msra.mxu0 %v1907
        %1926 = vmatprep.subr.bf16.mxu0 0
        %1927 = vmatpush1.bf16.msra.mxu0 %v1908
        %1928 = vmatprep.subr.bf16.mxu0 0
        %1929 = vmatpush1.bf16.msra.mxu0 %v1909
        %1930 = vmatprep.subr.bf16.mxu0 0
        %1931 = vmatpush1.bf16.msra.mxu0 %v1910
        %1932 = vmatprep.subr.bf16.mxu0 0
        %1933 = vmatpush1.bf16.msra.mxu0 %v1911
        %1934 = vmatprep.subr.bf16.mxu0 0
        %1935 = vmatpush1.bf16.msra.mxu0 %v1912
        %1936 = vmatprep.subr.bf16.mxu0 0
        %1937 = vmatpush1.bf16.msra.mxu0 %v1913
        %1938 = vmatprep.subr.bf16.mxu0 0
        %1939 = vmatpush1.bf16.msra.mxu0 0
        %1940 = vmatprep.subr.bf16.mxu0 0
        %1941 = vmatpush1.bf16.msra.mxu0 0
        %1942 = vmatprep.subr.bf16.mxu0 0
        %1943 = vmatpush1.bf16.msra.mxu0 0
        %1944 = vmatprep.subr.bf16.mxu0 0
        %1945 = vmatpush1.bf16.msra.mxu0 0
        %1946 = vmatprep.subr.bf16.mxu0 0
        %1947 = vmatpush1.bf16.msra.mxu0 0
        %1948 = vmatprep.subr.bf16.mxu0 0
        %1949 = vmatpush1.bf16.msra.mxu0 0
        %1950 = vmatprep.subr.bf16.mxu0 0
        %1951 = vmatpush1.bf16.msra.mxu0 0
        %1952 = vmatprep.subr.bf16.mxu0 0
        %1953 = vmatpush1.bf16.msra.mxu0 0
        %1954 = vmatprep.mubr.bf16.mxu0 0
        %1955 = vmatmul.mubr.bf16.gmra.mrb[0].mxu0 %v1743
        %v1956 = vpop.f32.mrb[0].mxu0
        %v1957 = vadd.f32 %v1873, %v1956
        %v1958 = vpop.f32.mrb[0].mxu0
        %v1959 = vpop.f32.mrb[0].mxu0
        %v1960 = vpop.f32.mrb[0].mxu0
        %1961 = vdwg.mxu0
        %v1962 = vpack.c.bf16 %v1740, %v1737
        %v1963 = vpack.c.bf16 %v1848, %v1848
        %1964 = vmatprep.subr.bf16.mxu0 0
        %1965 = vmatpush1.bf16.xpose.msra.mxu0 %v1963
        %1966 = vmatprep.subr.bf16.mxu0 0
        %1967 = vmatpush1.bf16.xpose.msra.mxu0 0
        %1968 = vmatprep.subr.bf16.mxu0 0
        %1969 = vmatpush1.bf16.xpose.msra.mxu0 0
        %1970 = vmatprep.subr.bf16.mxu0 0
        %1971 = vmatpush1.bf16.xpose.msra.mxu0 0
        %1972 = vmatprep.subr.bf16.mxu0 0
        %1973 = vmatpush1.bf16.xpose.msra.mxu0 0
        %1974 = vmatprep.subr.bf16.mxu0 0
        %1975 = vmatpush1.bf16.xpose.msra.mxu0 0
        %1976 = vmatprep.subr.bf16.mxu0 0
        %1977 = vmatpush1.bf16.xpose.msra.mxu0 0
        %1978 = vmatprep.subr.bf16.mxu0 0
        %1979 = vmatpush1.bf16.xpose.msra.mxu0 0
        %1980 = vmatprep.subr.bf16.mxu0 0
        %1981 = vmatpush1.bf16.xpose.msra.mxu0 0
        %1982 = vmatprep.subr.bf16.mxu0 0
        %1983 = vmatpush1.bf16.xpose.msra.mxu0 0
        %1984 = vmatprep.subr.bf16.mxu0 0
        %1985 = vmatpush1.bf16.xpose.msra.mxu0 0
        %1986 = vmatprep.subr.bf16.mxu0 0
        %1987 = vmatpush1.bf16.xpose.msra.mxu0 0
        %1988 = vmatprep.subr.bf16.mxu0 0
        %1989 = vmatpush1.bf16.xpose.msra.mxu0 0
        %1990 = vmatprep.subr.bf16.mxu0 0
        %1991 = vmatpush1.bf16.xpose.msra.mxu0 0
        %1992 = vmatprep.subr.bf16.mxu0 0
        %1993 = vmatpush1.bf16.xpose.msra.mxu0 0
        %1994 = vmatprep.subr.bf16.mxu0 0
        %1995 = vmatpush1.bf16.xpose.msra.mxu0 0
        %1996 = vmatprep.mubr.bf16.mxu0 0
        %1997 = vmatmul.mubr.bf16.gmra.mrb[0].mxu0 %v1962
        %v1998 = vpop.f32.mrb[0].mxu0
        %v1999 = vadd.f32 0.0, %v1998
        %v2000 = vpop.f32.mrb[0].mxu0
        %v2001 = vpop.f32.mrb[0].mxu0
        %v2002 = vadd.f32 0.0, %v2001
        %v2003 = vpop.f32.mrb[0].mxu0
        %2004 = vdwg.mxu0
        %v2005 = vsel %vm592, %v1999, -inf
        %2006 = vmax.xlane.f32.xlu0 %v2005
        %v2007 = vpop.xlane.xlu0 %2006
        %v2008 = vsel %vm592, %v2002, -inf
        %2009 = vmax.xlane.f32.xlu0 %v2008
        %v2010 = vpop.xlane.xlu0 %2009
        %v2011 = vsub.f32 %v1999, %v2007
        %v2012 = vsub.f32 %v2002, %v2010
        %v2013 = vmul.f32 %v2011, 1.442695
        %v2014 = vpow.pop %v2013
        %v2015 = vmul.f32 %v2012, 1.442695
        %v2016 = vpow.pop %v2015
        %v2017 = vsel %vm592, %v2014, 0.0
        %2018 = vadd.xlane.f32.xlu0 %v2017
        %v2019 = vpop.xlane.xlu0 %2018
        %v2020 = vsel %vm592, %v2016, 0.0
        %2021 = vadd.xlane.f32.xlu0 %v2020
        %v2022 = vpop.xlane.xlu0 %2021
        %v2023 = vrcp.pop %v2019
        %v2024 = vrcp.pop %v2022
        %v2025 = vmul.f32 %v2014, %v2023
        %v2026 = vmul.f32 %v2016, %v2024
        %v2027 = vpack.c.bf16 %v2026, %v2025
        %v2028 = vpack.c.bf16 %v1957, %v1957
        %v2030 = vsel %vm592, %v2027, 0
        %v2033 = vsel %vm609, %v2028, 0
        %2035 = vmatprep.subr.bf16.mxu0 0
        %2036 = vmatpush1.bf16.msra.mxu0 %v2033
        %2037 = vmatprep.subr.bf16.mxu0 0
        %2038 = vmatpush1.bf16.msra.mxu0 0
        %2039 = vmatprep.subr.bf16.mxu0 0
        %2040 = vmatpush1.bf16.msra.mxu0 0
        %2041 = vmatprep.subr.bf16.mxu0 0
        %2042 = vmatpush1.bf16.msra.mxu0 0
        %2043 = vmatprep.subr.bf16.mxu0 0
        %2044 = vmatpush1.bf16.msra.mxu0 0
        %2045 = vmatprep.subr.bf16.mxu0 0
        %2046 = vmatpush1.bf16.msra.mxu0 0
        %2047 = vmatprep.subr.bf16.mxu0 0
        %2048 = vmatpush1.bf16.msra.mxu0 0
        %2049 = vmatprep.subr.bf16.mxu0 0
        %2050 = vmatpush1.bf16.msra.mxu0 0
        %2051 = vmatprep.subr.bf16.mxu0 0
        %2052 = vmatpush1.bf16.msra.mxu0 0
        %2053 = vmatprep.subr.bf16.mxu0 0
        %2054 = vmatpush1.bf16.msra.mxu0 0
        %2055 = vmatprep.subr.bf16.mxu0 0
        %2056 = vmatpush1.bf16.msra.mxu0 0
        %2057 = vmatprep.subr.bf16.mxu0 0
        %2058 = vmatpush1.bf16.msra.mxu0 0
        %2059 = vmatprep.subr.bf16.mxu0 0
        %2060 = vmatpush1.bf16.msra.mxu0 0
        %2061 = vmatprep.subr.bf16.mxu0 0
        %2062 = vmatpush1.bf16.msra.mxu0 0
        %2063 = vmatprep.subr.bf16.mxu0 0
        %2064 = vmatpush1.bf16.msra.mxu0 0
        %2065 = vmatprep.subr.bf16.mxu0 0
        %2066 = vmatpush1.bf16.msra.mxu0 0
        %2067 = vmatprep.mubr.bf16.mxu0 0
        %2068 = vmatmul.mubr.bf16.gmra.mrb[0].mxu0 %v2030
        %v2069 = vpop.f32.mrb[0].mxu0
        %v2070 = vadd.f32 0.0, %v2069
        %v2071 = vpop.f32.mrb[0].mxu0
        %v2072 = vpop.f32.mrb[0].mxu0
        %v2073 = vadd.f32 0.0, %v2072
        %v2074 = vpop.f32.mrb[0].mxu0
        %2075 = vdwg.mxu0
        %v2076 = vpack.c.bf16 %v2073, %v2070
        %v2077 = vld [vmem:[#allocation5 + $0x340] sm:$0xf]
        %v2078 = vld [vmem:[#allocation5 + $0x344] sm:$0xf]
        %v2079 = vld [vmem:[#allocation5 + $0x348] sm:$0xf]
        %v2080 = vld [vmem:[#allocation5 + $0x34c] sm:$0xf]
        %v2081 = vld [vmem:[#allocation5 + $0x350] sm:$0xf]
        %v2082 = vld [vmem:[#allocation5 + $0x354] sm:$0xf]
        %v2083 = vld [vmem:[#allocation5 + $0x358] sm:$0xf]
        %v2084 = vld [vmem:[#allocation5 + $0x35c] sm:$0xf]
        %v2085 = vld [vmem:[#allocation5 + $0x360] sm:$0xf]
        %v2086 = vld [vmem:[#allocation5 + $0x364] sm:$0xf]
        %v2087 = vld [vmem:[#allocation5 + $0x368] sm:$0xf]
        %v2088 = vld [vmem:[#allocation5 + $0x36c] sm:$0xf]
        %v2089 = vld [vmem:[#allocation5 + $0x370] sm:$0xf]
        %v2090 = vld [vmem:[#allocation5 + $0x374] sm:$0xf]
        %v2091 = vld [vmem:[#allocation5 + $0x378] sm:$0xf]
        %v2092 = vld [vmem:[#allocation5 + $0x37c] sm:$0xf]
        %v2093 = vld [vmem:[#allocation7 + $0x98] sm:$0x1]
        %v2094 = vlaneseq
        %v2095 = vshrl.u32 %v2094, 7
        %v2096 = vsub.s32 0, %v2095
        %v2097 = vrot.slane %v2093, %v2096
        %v2114 = vunpack.c.l.b16 %v2077
        %v2115 = vunpack.c.l.b16 %v2078
        %v2116 = vunpack.c.l.b16 %v2079
        %v2117 = vunpack.c.l.b16 %v2080
        %v2118 = vunpack.c.l.b16 %v2081
        %v2119 = vunpack.c.l.b16 %v2082
        %v2120 = vunpack.c.l.b16 %v2083
        %v2121 = vunpack.c.l.b16 %v2084
        %v2122 = vunpack.c.l.b16 %v2085
        %v2123 = vunpack.c.l.b16 %v2086
        %v2124 = vunpack.c.l.b16 %v2087
        %v2125 = vunpack.c.l.b16 %v2088
        %v2126 = vunpack.c.l.b16 %v2089
        %v2127 = vunpack.c.l.b16 %v2090
        %v2128 = vunpack.c.l.b16 %v2091
        %v2129 = vunpack.c.l.b16 %v2092
        %v2130 = vpack.c.b16 %v2115, %v2114
        %v2131 = vpack.c.b16 %v2117, %v2116
        %v2132 = vpack.c.b16 %v2119, %v2118
        %v2133 = vpack.c.b16 %v2121, %v2120
        %v2134 = vpack.c.b16 %v2123, %v2122
        %v2135 = vpack.c.b16 %v2125, %v2124
        %v2136 = vpack.c.b16 %v2127, %v2126
        %v2137 = vpack.c.b16 %v2129, %v2128
        %2146 = vmatprep.subr.bf16.mxu0 0
        %2147 = vmatpush1.bf16.msra.mxu0 %v2130
        %2148 = vmatprep.subr.bf16.mxu0 0
        %2149 = vmatpush1.bf16.msra.mxu0 %v2131
        %2150 = vmatprep.subr.bf16.mxu0 0
        %2151 = vmatpush1.bf16.msra.mxu0 %v2132
        %2152 = vmatprep.subr.bf16.mxu0 0
        %2153 = vmatpush1.bf16.msra.mxu0 %v2133
        %2154 = vmatprep.subr.bf16.mxu0 0
        %2155 = vmatpush1.bf16.msra.mxu0 %v2134
        %2156 = vmatprep.subr.bf16.mxu0 0
        %2157 = vmatpush1.bf16.msra.mxu0 %v2135
        %2158 = vmatprep.subr.bf16.mxu0 0
        %2159 = vmatpush1.bf16.msra.mxu0 %v2136
        %2160 = vmatprep.subr.bf16.mxu0 0
        %2161 = vmatpush1.bf16.msra.mxu0 %v2137
        %2162 = vmatprep.subr.bf16.mxu0 0
        %2163 = vmatpush1.bf16.msra.mxu0 0
        %2164 = vmatprep.subr.bf16.mxu0 0
        %2165 = vmatpush1.bf16.msra.mxu0 0
        %2166 = vmatprep.subr.bf16.mxu0 0
        %2167 = vmatpush1.bf16.msra.mxu0 0
        %2168 = vmatprep.subr.bf16.mxu0 0
        %2169 = vmatpush1.bf16.msra.mxu0 0
        %2170 = vmatprep.subr.bf16.mxu0 0
        %2171 = vmatpush1.bf16.msra.mxu0 0
        %2172 = vmatprep.subr.bf16.mxu0 0
        %2173 = vmatpush1.bf16.msra.mxu0 0
        %2174 = vmatprep.subr.bf16.mxu0 0
        %2175 = vmatpush1.bf16.msra.mxu0 0
        %2176 = vmatprep.subr.bf16.mxu0 0
        %2177 = vmatpush1.bf16.msra.mxu0 0
        %2178 = vmatprep.mubr.bf16.mxu0 0
        %2179 = vmatmul.mubr.bf16.gmra.mrb[0].mxu0 %v2076
        %v2180 = vpop.f32.mrb[0].mxu0
        %v2181 = vadd.f32 %v2097, %v2180
        %v2182 = vpop.f32.mrb[0].mxu0
        %v2183 = vpop.f32.mrb[0].mxu0
        %v2184 = vadd.f32 %v2097, %v2183
        %v2185 = vpop.f32.mrb[0].mxu0
        %2186 = vdwg.mxu0
        %v2187 = vadd.f32 %v1630, %v2181
        %v2188 = vadd.f32 %v1631, %v2184
        %2189 = vadd.xlane.f32.xlu0 %v2187
        %v2190 = vpop.xlane.xlu0 %2189
        %2191 = vadd.xlane.f32.xlu0 %v2188
        %v2192 = vpop.xlane.xlu0 %2191
        %v2193 = vmul.f32 %v2190, 0.03125
        %v2194 = vmul.f32 %v2192, 0.03125
        %v2195 = vsub.f32 %v2187, %v2193
        %v2196 = vsub.f32 %v2188, %v2194
        %v2197 = vmul.f32 %v2195, %v220
        %v2198 = vmul.f32 %v2196, %v220
        %v2199 = vmul.f32 %v2197, %v2197
        %v2200 = vmul.f32 %v2198, %v2198
        %2201 = vadd.xlane.f32.xlu0 %v2199
        %v2202 = vpop.xlane.xlu0 %2201
        %2203 = vadd.xlane.f32.xlu0 %v2200
        %v2204 = vpop.xlane.xlu0 %2203
        %v2205 = vmul.f32 %v2202, 0.03125
        %v2206 = vmul.f32 %v2204, 0.03125
        %v2207 = vadd.f32 %v2205, 1e-05
        %v2208 = vadd.f32 %v2206, 1e-05
        %v2209 = vrsqrt.pop %v2207
        %v2210 = vrsqrt.pop %v2208
        %v2211 = vmul.f32 %v2197, %v2209
        %v2212 = vmul.f32 %v2198, %v2210
        %v2213 = vld [vmem:[#allocation7 + $0xa0] sm:$0x1]
        %v2214 = vlaneseq
        %v2215 = vshrl.u32 %v2214, 7
        %v2216 = vsub.s32 0, %v2215
        %v2217 = vrot.slane %v2213, %v2216
        %v2218 = vmul.f32 %v2211, %v2217
        %v2219 = vmul.f32 %v2212, %v2217
        %v2220 = vld [vmem:[#allocation7 + $0xa8] sm:$0x1]
        %v2221 = vlaneseq
        %v2222 = vshrl.u32 %v2221, 7
        %v2223 = vsub.s32 0, %v2222
        %v2224 = vrot.slane %v2220, %v2223
        %v2225 = vadd.f32 %v2218, %v2224
        %v2226 = vadd.f32 %v2219, %v2224
        %v2227 = vpack.c.bf16 %v2226, %v2225
        %v2228 = vld [vmem:[#allocation5 + $0x380] sm:$0xf]
        %v2229 = vld [vmem:[#allocation5 + $0x384] sm:$0xf]
        %v2230 = vld [vmem:[#allocation5 + $0x388] sm:$0xf]
        %v2231 = vld [vmem:[#allocation5 + $0x38c] sm:$0xf]
        %v2232 = vld [vmem:[#allocation5 + $0x390] sm:$0xf]
        %v2233 = vld [vmem:[#allocation5 + $0x394] sm:$0xf]
        %v2234 = vld [vmem:[#allocation5 + $0x398] sm:$0xf]
        %v2235 = vld [vmem:[#allocation5 + $0x39c] sm:$0xf]
        %v2236 = vld [vmem:[#allocation5 + $0x3a0] sm:$0xf]
        %v2237 = vld [vmem:[#allocation5 + $0x3a4] sm:$0xf]
        %v2238 = vld [vmem:[#allocation5 + $0x3a8] sm:$0xf]
        %v2239 = vld [vmem:[#allocation5 + $0x3ac] sm:$0xf]
        %v2240 = vld [vmem:[#allocation5 + $0x3b0] sm:$0xf]
        %v2241 = vld [vmem:[#allocation5 + $0x3b4] sm:$0xf]
        %v2242 = vld [vmem:[#allocation5 + $0x3b8] sm:$0xf]
        %v2243 = vld [vmem:[#allocation5 + $0x3bc] sm:$0xf]
        %v2244 = vld [vmem:[#allocation7 + $0xb0] sm:$0x1]
        %v2245 = vlaneseq
        %v2246 = vshrl.u32 %v2245, 7
        %v2247 = vsub.s32 0, %v2246
        %v2248 = vrot.slane %v2244, %v2247
        %v2265 = vunpack.c.l.b16 %v2228
        %v2266 = vunpack.c.l.b16 %v2229
        %v2267 = vunpack.c.l.b16 %v2230
        %v2268 = vunpack.c.l.b16 %v2231
        %v2269 = vunpack.c.l.b16 %v2232
        %v2270 = vunpack.c.l.b16 %v2233
        %v2271 = vunpack.c.l.b16 %v2234
        %v2272 = vunpack.c.l.b16 %v2235
        %v2273 = vunpack.c.l.b16 %v2236
        %v2274 = vunpack.c.l.b16 %v2237
        %v2275 = vunpack.c.l.b16 %v2238
        %v2276 = vunpack.c.l.b16 %v2239
        %v2277 = vunpack.c.l.b16 %v2240
        %v2278 = vunpack.c.l.b16 %v2241
        %v2279 = vunpack.c.l.b16 %v2242
        %v2280 = vunpack.c.l.b16 %v2243
        %v2281 = vpack.c.b16 %v2266, %v2265
        %v2282 = vpack.c.b16 %v2268, %v2267
        %v2283 = vpack.c.b16 %v2270, %v2269
        %v2284 = vpack.c.b16 %v2272, %v2271
        %v2285 = vpack.c.b16 %v2274, %v2273
        %v2286 = vpack.c.b16 %v2276, %v2275
        %v2287 = vpack.c.b16 %v2278, %v2277
        %v2288 = vpack.c.b16 %v2280, %v2279
        %2297 = vmatprep.subr.bf16.mxu0 0
        %2298 = vmatpush1.bf16.msra.mxu0 %v2281
        %2299 = vmatprep.subr.bf16.mxu0 0
        %2300 = vmatpush1.bf16.msra.mxu0 %v2282
        %2301 = vmatprep.subr.bf16.mxu0 0
        %2302 = vmatpush1.bf16.msra.mxu0 %v2283
        %2303 = vmatprep.subr.bf16.mxu0 0
        %2304 = vmatpush1.bf16.msra.mxu0 %v2284
        %2305 = vmatprep.subr.bf16.mxu0 0
        %2306 = vmatpush1.bf16.msra.mxu0 %v2285
        %2307 = vmatprep.subr.bf16.mxu0 0
        %2308 = vmatpush1.bf16.msra.mxu0 %v2286
        %2309 = vmatprep.subr.bf16.mxu0 0
        %2310 = vmatpush1.bf16.msra.mxu0 %v2287
        %2311 = vmatprep.subr.bf16.mxu0 0
        %2312 = vmatpush1.bf16.msra.mxu0 %v2288
        %2313 = vmatprep.subr.bf16.mxu0 0
        %2314 = vmatpush1.bf16.msra.mxu0 0
        %2315 = vmatprep.subr.bf16.mxu0 0
        %2316 = vmatpush1.bf16.msra.mxu0 0
        %2317 = vmatprep.subr.bf16.mxu0 0
        %2318 = vmatpush1.bf16.msra.mxu0 0
        %2319 = vmatprep.subr.bf16.mxu0 0
        %2320 = vmatpush1.bf16.msra.mxu0 0
        %2321 = vmatprep.subr.bf16.mxu0 0
        %2322 = vmatpush1.bf16.msra.mxu0 0
        %2323 = vmatprep.subr.bf16.mxu0 0
        %2324 = vmatpush1.bf16.msra.mxu0 0
        %2325 = vmatprep.subr.bf16.mxu0 0
        %2326 = vmatpush1.bf16.msra.mxu0 0
        %2327 = vmatprep.subr.bf16.mxu0 0
        %2328 = vmatpush1.bf16.msra.mxu0 0
        %2329 = vmatprep.mubr.bf16.mxu0 0
        %2330 = vmatmul.mubr.bf16.gmra.mrb[0].mxu0 %v2227
        %v2331 = vpop.f32.mrb[0].mxu0
        %v2332 = vadd.f32 %v2248, %v2331
        %v2333 = vpop.f32.mrb[0].mxu0
        %v2334 = vpop.f32.mrb[0].mxu0
        %v2335 = vadd.f32 %v2248, %v2334
        %v2336 = vpop.f32.mrb[0].mxu0
        %2337 = vdwg.mxu0
        %v2338 = vmax.f32 %v2332, 0.0
        %v2339 = vmax.f32 %v2335, 0.0
        %v2340 = vpack.c.bf16 %v2339, %v2338
        %v2341 = vld [vmem:[#allocation5 + $0x3c0] sm:$0xf]
        %v2342 = vld [vmem:[#allocation5 + $0x3c4] sm:$0xf]
        %v2343 = vld [vmem:[#allocation5 + $0x3c8] sm:$0xf]
        %v2344 = vld [vmem:[#allocation5 + $0x3cc] sm:$0xf]
        %v2345 = vld [vmem:[#allocation5 + $0x3d0] sm:$0xf]
        %v2346 = vld [vmem:[#allocation5 + $0x3d4] sm:$0xf]
        %v2347 = vld [vmem:[#allocation5 + $0x3d8] sm:$0xf]
        %v2348 = vld [vmem:[#allocation5 + $0x3dc] sm:$0xf]
        %v2349 = vld [vmem:[#allocation5 + $0x3e0] sm:$0xf]
        %v2350 = vld [vmem:[#allocation5 + $0x3e4] sm:$0xf]
        %v2351 = vld [vmem:[#allocation5 + $0x3e8] sm:$0xf]
        %v2352 = vld [vmem:[#allocation5 + $0x3ec] sm:$0xf]
        %v2353 = vld [vmem:[#allocation5 + $0x3f0] sm:$0xf]
        %v2354 = vld [vmem:[#allocation5 + $0x3f4] sm:$0xf]
        %v2355 = vld [vmem:[#allocation5 + $0x3f8] sm:$0xf]
        %v2356 = vld [vmem:[#allocation5 + $0x3fc] sm:$0xf]
        %v2357 = vld [vmem:[#allocation7 + $0xb8] sm:$0x1]
        %v2358 = vlaneseq
        %v2359 = vshrl.u32 %v2358, 7
        %v2360 = vsub.s32 0, %v2359
        %v2361 = vrot.slane %v2357, %v2360
        %v2378 = vunpack.c.l.b16 %v2341
        %v2379 = vunpack.c.l.b16 %v2342
        %v2380 = vunpack.c.l.b16 %v2343
        %v2381 = vunpack.c.l.b16 %v2344
        %v2382 = vunpack.c.l.b16 %v2345
        %v2383 = vunpack.c.l.b16 %v2346
        %v2384 = vunpack.c.l.b16 %v2347
        %v2385 = vunpack.c.l.b16 %v2348
        %v2386 = vunpack.c.l.b16 %v2349
        %v2387 = vunpack.c.l.b16 %v2350
        %v2388 = vunpack.c.l.b16 %v2351
        %v2389 = vunpack.c.l.b16 %v2352
        %v2390 = vunpack.c.l.b16 %v2353
        %v2391 = vunpack.c.l.b16 %v2354
        %v2392 = vunpack.c.l.b16 %v2355
        %v2393 = vunpack.c.l.b16 %v2356
        %v2394 = vpack.c.b16 %v2379, %v2378
        %v2395 = vpack.c.b16 %v2381, %v2380
        %v2396 = vpack.c.b16 %v2383, %v2382
        %v2397 = vpack.c.b16 %v2385, %v2384
        %v2398 = vpack.c.b16 %v2387, %v2386
        %v2399 = vpack.c.b16 %v2389, %v2388
        %v2400 = vpack.c.b16 %v2391, %v2390
        %v2401 = vpack.c.b16 %v2393, %v2392
        %2410 = vmatprep.subr.bf16.mxu0 0
        %2411 = vmatpush1.bf16.msra.mxu0 %v2394
        %2412 = vmatprep.subr.bf16.mxu0 0
        %2413 = vmatpush1.bf16.msra.mxu0 %v2395
        %2414 = vmatprep.subr.bf16.mxu0 0
        %2415 = vmatpush1.bf16.msra.mxu0 %v2396
        %2416 = vmatprep.subr.bf16.mxu0 0
        %2417 = vmatpush1.bf16.msra.mxu0 %v2397
        %2418 = vmatprep.subr.bf16.mxu0 0
        %2419 = vmatpush1.bf16.msra.mxu0 %v2398
        %2420 = vmatprep.subr.bf16.mxu0 0
        %2421 = vmatpush1.bf16.msra.mxu0 %v2399
        %2422 = vmatprep.subr.bf16.mxu0 0
        %2423 = vmatpush1.bf16.msra.mxu0 %v2400
        %2424 = vmatprep.subr.bf16.mxu0 0
        %2425 = vmatpush1.bf16.msra.mxu0 %v2401
        %2426 = vmatprep.subr.bf16.mxu0 0
        %2427 = vmatpush1.bf16.msra.mxu0 0
        %2428 = vmatprep.subr.bf16.mxu0 0
        %2429 = vmatpush1.bf16.msra.mxu0 0
        %2430 = vmatprep.subr.bf16.mxu0 0
        %2431 = vmatpush1.bf16.msra.mxu0 0
        %2432 = vmatprep.subr.bf16.mxu0 0
        %2433 = vmatpush1.bf16.msra.mxu0 0
        %2434 = vmatprep.subr.bf16.mxu0 0
        %2435 = vmatpush1.bf16.msra.mxu0 0
        %2436 = vmatprep.subr.bf16.mxu0 0
        %2437 = vmatpush1.bf16.msra.mxu0 0
        %2438 = vmatprep.subr.bf16.mxu0 0
        %2439 = vmatpush1.bf16.msra.mxu0 0
        %2440 = vmatprep.subr.bf16.mxu0 0
        %2441 = vmatpush1.bf16.msra.mxu0 0
        %2442 = vmatprep.mubr.bf16.mxu0 0
        %2443 = vmatmul.mubr.bf16.gmra.mrb[0].mxu0 %v2340
        %v2444 = vpop.f32.mrb[0].mxu0
        %v2445 = vadd.f32 %v2361, %v2444
        %v2446 = vpop.f32.mrb[0].mxu0
        %v2447 = vpop.f32.mrb[0].mxu0
        %v2448 = vadd.f32 %v2361, %v2447
        %v2449 = vpop.f32.mrb[0].mxu0
        %2450 = vdwg.mxu0
        %v2451 = vadd.f32 %v2225, %v2445
        %v2452 = vadd.f32 %v2226, %v2448
        %2453 = vadd.xlane.f32.xlu0 %v2451
        %v2454 = vpop.xlane.xlu0 %2453
        %2455 = vadd.xlane.f32.xlu0 %v2452
        %v2456 = vpop.xlane.xlu0 %2455
        %v2457 = vmul.f32 %v2454, 0.03125
        %v2458 = vmul.f32 %v2456, 0.03125
        %v2459 = vsub.f32 %v2451, %v2457
        %v2460 = vsub.f32 %v2452, %v2458
        %v2461 = vmul.f32 %v2459, %v220
        %v2462 = vmul.f32 %v2460, %v220
        %v2463 = vmul.f32 %v2461, %v2461
        %v2464 = vmul.f32 %v2462, %v2462
        %2465 = vadd.xlane.f32.xlu0 %v2463
        %v2466 = vpop.xlane.xlu0 %2465
        %2467 = vadd.xlane.f32.xlu0 %v2464
        %v2468 = vpop.xlane.xlu0 %2467
        %v2469 = vmul.f32 %v2466, 0.03125
        %v2470 = vmul.f32 %v2468, 0.03125
        %v2471 = vadd.f32 %v2469, 1e-05
        %v2472 = vadd.f32 %v2470, 1e-05
        %v2473 = vrsqrt.pop %v2471
        %v2474 = vrsqrt.pop %v2472
        %v2475 = vmul.f32 %v2461, %v2473
        %v2476 = vmul.f32 %v2462, %v2474
        %v2477 = vld [vmem:[#allocation7 + $0xc0] sm:$0x1]
        %v2478 = vlaneseq
        %v2479 = vshrl.u32 %v2478, 7
        %v2480 = vsub.s32 0, %v2479
        %v2481 = vrot.slane %v2477, %v2480
        %v2482 = vmul.f32 %v2475, %v2481
        %v2483 = vmul.f32 %v2476, %v2481
        %v2484 = vld [vmem:[#allocation7 + $0xc8] sm:$0x1]
        %v2485 = vlaneseq
        %v2486 = vshrl.u32 %v2485, 7
        %v2487 = vsub.s32 0, %v2486
        %v2488 = vrot.slane %v2484, %v2487
        %v2489 = vadd.f32 %v2482, %v2488
        %v2490 = vadd.f32 %v2483, %v2488
        %2491 = vst [vmem:[%s214] sm:$0xff] %v2489
        %2492 = vst [vmem:[%s214 + $0x8] sm:$0xff] %v2490
        %s2493 = sand.u32 %s97, 1
        %s2494 = scalar_lea.sflag [#allocation4], %s2493
        %s2495 = sand.u32 %s97, 1
        %s2496 = smul.addr %s2495, 16
        %s2497 = scalar_lea.vmem [#allocation8], %s2496
        // Predicated region
        $region45: #{tpu_custom_call.1} parent=31 // pred_check
          %p2498 = pneg %p107
        $region46: #{tpu_custom_call.1} parent=31 // pred_check_branch
          %2500 = sbr.rel (%p2498) target = $region48
        $region47: #{tpu_custom_call.1} parent=31 // pred_region
          %s2502 = ssub.s32 256, 256
          %2503 = vsyncadd %s2494, %s2502
          %s2504 = smul.addr %s21, 2
          %s2505 = smul.addr %s2504, 128
          %s2506 = scalar_lea.hbm %s3, %s2505
          %s2507 = sshll.u32 %s2497, 4
          %s2508 = int_to_ptr.vmem [resolvable:$true] %s2507
          %2513 = dma.vmem_to_hbm [thread:$0]  %s2508, 256, %s2506, %s2494, 128, 128, 8
        $region48: #{tpu_custom_call.1} parent=31 // pred_fallthru
          _
      $region32: #{tpu_custom_call.1} parent=5 // pred_fallthru
        _
      %p2514 = scmp.le.s32.totalorder 2, %s16
      // Predicated region
      $region49: #{tpu_custom_call.1} parent=5 // pred_check
        %p2515 = pneg %p2514
      $region50: #{tpu_custom_call.1} parent=5 // pred_check_branch
        %2517 = sbr.rel (%p2515) target = $region52
      $region51: #{tpu_custom_call.1} parent=5 // pred_region
        %s2518 = ssub.s32 %s16, 2
        // Predicated region
        $region53: #{tpu_custom_call.1} parent=51 // pred_check
          %p2519 = pneg %p113
        $region54: #{tpu_custom_call.1} parent=51 // pred_check_branch
          %2521 = sbr.rel (%p2519) target = $region56
        $region55: #{tpu_custom_call.1} parent=51 // pred_region
          %s2522 = sand.u32 %s98, 1
          %s2523 = scalar_lea.sflag [#allocation4], %s2522
          %s2524 = sand.u32 %s98, 1
          %s2525 = smul.addr %s2524, 16
          %s2526 = scalar_lea.vmem [#allocation8], %s2525
          %2527 = dma.done %s2523, 256
        $region56: #{tpu_custom_call.1} parent=51 // pred_fallthru
          _
      $region52: #{tpu_custom_call.1} parent=5 // pred_fallthru
        _
    $region6: #{tpu_custom_call.1} parent=1 // loop_footer
      %s20 = sadd.s32 1, %s16
    $region7: #{tpu_custom_call.1} parent=1 // loop_footer_branch
      %15 = sbr.rel target = $region3
    $region8: #{tpu_custom_call.1} parent=1 // loop_exit
      _
    %2528 = vsyncpa [#allocation3], 1
    %s2529 = scalar_lea.sflag [#allocation3], 1
    %2530 = vsyncpa %s2529, 1
    %2531 = vsyncpa [#allocation6], 1
    %2532 = vsyncpa [#allocation4], 1
    %s2533 = scalar_lea.sflag [#allocation4], 1
    %2534 = vsyncpa %s2533, 1

</llo_original>
